<compile_context>
chip_gen: v7x
topology: tpu7x:2x2x1
jax: 0.10.0
libtpu: 0.0.40
codegen_flags: <defaults>
</compile_context>

<pallas_src>
import jax
import jax.numpy as jnp
from jax.experimental import pallas as pl
from jax.experimental.pallas import tpu as pltpu

C_EFF = 1280          # efficientnet_b0.features output channels
C_VIT = 768           # ViT-base hidden size (CLS token)
NUM_CLASSES = 4
N_PAD = 128           # lane-dense padded output width (>= NUM_CLASSES)

_VMEM_TILE_BUDGET = 24 * 1024 * 1024   # per-step activation buffers (v7x-safe)


def _round_up(x, m):
    return ((x + m - 1) // m) * m


def _pick_batch_tile(B, S, eff_isz, vit_isz, block_b):
    """Pick the batch tile size: as large as the VMEM budget allows (bigger,
    fewer grid steps -> less per-step overhead) but with >=2 grid steps when
    the batch allows it (v7x megacore splits the 'parallel' axis over 2 TCs)."""
    if B <= 16:
        return B                       # single block; small dims == full dims
    # Bytes per batch row resident in VMEM per grid step:
    #   eff block (double-buffered) + its f32 pooling temp + vit + output.
    row_bytes = (S * C_EFF * (2 * eff_isz + 4)
                 + C_VIT * 2 * vit_isz
                 + N_PAD * 4 * 2)
    tb = (_VMEM_TILE_BUDGET // row_bytes) // 16 * 16
    tb = max(16, min(block_b, tb))
    # Keep at least 2 grid steps so both v7x TensorCores get work.
    tb = min(tb, max(16, _round_up(-(-B // 2), 16)))
    return tb


def _ensemble_head_kernel(eff_ref, vit_ref, w_eff_ref, w_vit_ref, b_ref, o_ref):
    """eff_ref  : [TB, S, C_EFF]  (producer dtype, bf16 here) channels-last feature map
       vit_ref  : [TB, C_VIT]     (producer dtype) ViT CLS token
       w_eff_ref: [C_EFF, N_PAD]  bf16
       w_vit_ref: [C_VIT, N_PAD]  bf16
       b_ref    : [1, N_PAD]      f32
       o_ref    : [TB, N_PAD]     f32
    """
    # Fused AdaptiveAvgPool2d((1,1)) + flatten: mean over the spatial sublane
    # axis, accumulated in f32 (XLU/VPU work, hidden under the HBM-bound DMA).
    pooled = jnp.mean(eff_ref[...].astype(jnp.float32), axis=1)          # [TB, C_EFF]

    # torch.cat((eff, vit), dim=1) @ W + b
    #   == pooled @ W[:C_EFF] + vit @ W[C_EFF:] + b   (no materialized concat)
    acc = jnp.dot(pooled.astype(jnp.bfloat16), w_eff_ref[...],
                  preferred_element_type=jnp.float32)
    acc = acc + jnp.dot(vit_ref[...].astype(jnp.bfloat16), w_vit_ref[...],
                        preferred_element_type=jnp.float32)
    o_ref[...] = (acc + b_ref[...]).astype(o_ref.dtype)


def prepare_fc_params(w_fc, b_fc):
    """One-time prep (hoisted out of the forward): pad nn.Linear(2048, n) params
    to a lane-dense N_PAD-wide last dim, split eff/vit rows, cast weights bf16."""
    num_classes = w_fc.shape[1]
    assert w_fc.shape[0] == C_EFF + C_VIT and num_classes <= N_PAD
    w_pad = jnp.zeros((C_EFF + C_VIT, N_PAD), jnp.float32)
    w_pad = w_pad.at[:, :num_classes].set(w_fc.astype(jnp.float32))
    w_eff = w_pad[:C_EFF].astype(jnp.bfloat16)                           # [1280, 128]
    w_vit = w_pad[C_EFF:].astype(jnp.bfloat16)                           # [768, 128]
    b_arr = jnp.zeros((1, N_PAD), jnp.float32)
    b_arr = b_arr.at[0, :num_classes].set(b_fc.astype(jnp.float32))
    return w_eff, w_vit, b_arr


def ensemble_head(eff_feat, vit_cls, w_eff, w_vit, b_arr, *,
                  num_classes=NUM_CLASSES, block_b=512):
    """eff_feat: [B, Hf, Wf, 1280] (NHWC) or [B, S, 1280] channels-last
       EfficientNet feature map; vit_cls: [B, 768] ViT CLS token;
       (w_eff, w_vit, b_arr) from prepare_fc_params.  -> [B, num_classes] f32."""
    if eff_feat.ndim == 4:
        B, Hf, Wf, C = eff_feat.shape
        eff_feat = eff_feat.reshape(B, Hf * Wf, C)       # contiguous merge, no copy
    B, S, C = eff_feat.shape
    assert C == C_EFF and vit_cls.shape == (B, C_VIT)
    assert w_eff.shape == (C_EFF, N_PAD) and w_vit.shape == (C_VIT, N_PAD)
    assert b_arr.shape == (1, N_PAD) and num_classes <= N_PAD

    tb = _pick_batch_tile(B, S, eff_feat.dtype.itemsize,
                          vit_cls.dtype.itemsize, block_b)
    grid = (pl.cdiv(B, tb),)

    bytes_accessed = (eff_feat.size * eff_feat.dtype.itemsize
                      + vit_cls.size * vit_cls.dtype.itemsize
                      + w_eff.size * 2 + w_vit.size * 2
                      + b_arr.size * 4 + B * N_PAD * 4)
    cost = pl.CostEstimate(flops=2 * B * (C_EFF + C_VIT) * N_PAD + B * S * C_EFF,
                           transcendentals=0,
                           bytes_accessed=bytes_accessed)

    out = pl.pallas_call(
        _ensemble_head_kernel,
        out_shape=jax.ShapeDtypeStruct((B, N_PAD), jnp.float32),
        grid=grid,
        in_specs=[
            pl.BlockSpec((tb, S, C_EFF), lambda i: (i, 0, 0)),
            pl.BlockSpec((tb, C_VIT), lambda i: (i, 0)),
            pl.BlockSpec((C_EFF, N_PAD), lambda i: (0, 0)),
            pl.BlockSpec((C_VIT, N_PAD), lambda i: (0, 0)),
            pl.BlockSpec((1, N_PAD), lambda i: (0, 0)),
        ],
        out_specs=pl.BlockSpec((tb, N_PAD), lambda i: (i, 0)),
        compiler_params=pltpu.CompilerParams(
            dimension_semantics=("parallel",),
            vmem_limit_bytes=48 * 1024 * 1024),
        cost_estimate=cost,
    )(eff_feat, vit_cls, w_eff, w_vit, b_arr)

    return out[:, :num_classes]


if __name__ == "__main__":
    key = jax.random.PRNGKey(0)
    k_x, k_es, k_vs, k_w, k_b = jax.random.split(key, 5)

    # Small deterministic input images (NCHW, 3-channel like the torch model).
    B, H, W = 2, 16, 16
    x = jax.random.normal(k_x, (B, 3, H, W), dtype=jnp.float32)

    # --- synthetic backbone stand-ins (plain-JAX glue, deterministic) --------
    # TODO(synk): pretrained EfficientNet-B0 / ViT-B-16 + PIL preprocessing are
    # not reproducible in-script; on TPU the backbone emits its feature map
    # channels-last (NHWC) in bf16, which is what the head kernel consumes.
    Hf = Wf = 4
    patches = x.reshape(B, 3, Hf, H // Hf, Wf, W // Wf).mean(axis=(3, 5))   # [B,3,4,4]
    patches = jnp.transpose(patches, (0, 2, 3, 1))                          # [B,4,4,3]
    w_eff_stub = jax.random.normal(k_es, (3, C_EFF), jnp.float32) * 0.1
    eff_feat = jnp.einsum("bhwc,cd->bhwd", patches,
                          w_eff_stub).astype(jnp.bfloat16)                  # [B,4,4,1280]

    w_vit_stub = jax.random.normal(k_vs, (3 * H * W, C_VIT), jnp.float32) * 0.05
    vit_cls = (x.reshape(B, -1) @ w_vit_stub).astype(jnp.bfloat16)          # [B,768]

    # --- fc parameters: nn.Linear(1280 + 768, num_classes) default init ------
    fan_in = C_EFF + C_VIT
    bound = 1.0 / float(fan_in) ** 0.5
    w_fc = jax.random.uniform(k_w, (fan_in, NUM_CLASSES), jnp.float32, -bound, bound)
    b_fc = jax.random.uniform(k_b, (NUM_CLASSES,), jnp.float32, -bound, bound)

    # One-time lane-dense padding / bf16 cast of the fc params.
    w_eff_p, w_vit_p, b_p = prepare_fc_params(w_fc, b_fc)

    # --- run the fused Pallas head -------------------------------------------
    head = jax.jit(lambda e, v, we, wv, b: ensemble_head(
        e, v, we, wv, b, num_classes=NUM_CLASSES))
    out = jax.block_until_ready(head(eff_feat, vit_cls, w_eff_p, w_vit_p, b_p))
    assert out.shape == (B, NUM_CLASSES)

    # Plain-JAX references for the head (pool + flatten + concat + fc).
    S = Hf * Wf
    pooled_ref = eff_feat.astype(jnp.float32).reshape(B, S, C_EFF).mean(axis=1)
    vit_f32 = vit_cls.astype(jnp.float32)
    feats = jnp.concatenate([pooled_ref, vit_f32], axis=1)                  # [B,2048]
    ref_f32 = feats @ w_fc + b_fc
    # Reference with the same bf16-quantized MXU operands (f32 accumulate).
    ref_q = (pooled_ref.astype(jnp.bfloat16).astype(jnp.float32)
             @ w_fc[:C_EFF].astype(jnp.bfloat16).astype(jnp.float32)
             + vit_f32.astype(jnp.bfloat16).astype(jnp.float32)
             @ w_fc[C_EFF:].astype(jnp.bfloat16).astype(jnp.float32)
             + b_fc)

    assert jnp.allclose(out, ref_q, atol=2e-3, rtol=2e-3), "mismatch vs bf16-operand ref"
    assert jnp.allclose(out, ref_f32, atol=5e-2, rtol=5e-2), "mismatch vs f32 reference"

    print("KERNEL_OK")
</pallas_src>

<mosaic_0001>
module attributes {stable_mosaic.version = 11 : i64} {
  func.func @_ensemble_head_kernel(%arg0: i32, %arg1: memref<2x16x1280xbf16, #tpu.memory_space<vmem>>, %arg2: memref<2x768xbf16, #tpu.memory_space<vmem>>, %arg3: memref<1280x128xbf16, #tpu.memory_space<vmem>>, %arg4: memref<768x128xbf16, #tpu.memory_space<vmem>>, %arg5: memref<1x128xf32, #tpu.memory_space<vmem>>, %arg6: memref<2x128xf32, #tpu.memory_space<vmem>>) attributes {dimension_semantics = [#tpu.dimension_semantics<parallel>], iteration_bounds = array<i64: 1>, scalar_prefetch = 0 : i64, scratch_operands = 0 : i64, tpu.core_type = #tpu.core_type<tc>, window_params = [{transform_indices = @transform_0, window_bounds = array<i64: 2, 16, 1280>}, {transform_indices = @transform_1, window_bounds = array<i64: 2, 768>}, {pipeline_mode = #tpu.pipeline_mode<synchronous>, transform_indices = @transform_2, window_bounds = array<i64: 1280, 128>}, {pipeline_mode = #tpu.pipeline_mode<synchronous>, transform_indices = @transform_3, window_bounds = array<i64: 768, 128>}, {pipeline_mode = #tpu.pipeline_mode<synchronous>, transform_indices = @transform_4, window_bounds = array<i64: 1, 128>}, {transform_indices = @transform_5, window_bounds = array<i64: 2, 128>}]} {
    %c0 = arith.constant 0 : index
    %c0_0 = arith.constant 0 : index
    %c0_1 = arith.constant 0 : index
    %0 = vector.load %arg1[%c0, %c0_0, %c0_1] : memref<2x16x1280xbf16, #tpu.memory_space<vmem>>, vector<2x16x1280xbf16>
    %1 = arith.extf %0 : vector<2x16x1280xbf16> to vector<2x16x1280xf32>
    %cst = arith.constant dense<0.000000e+00> : vector<2x1280xf32>
    %2 = vector.multi_reduction <add>, %1, %cst [1] : vector<2x16x1280xf32> to vector<2x1280xf32>
    %cst_2 = arith.constant 1.600000e+01 : f32
    %3 = vector.broadcast %cst_2 : f32 to vector<2x1280xf32>
    %4 = arith.divf %2, %3 : vector<2x1280xf32>
    %5 = arith.truncf %4 : vector<2x1280xf32> to vector<2x1280xbf16>
    %c0_3 = arith.constant 0 : index
    %c0_4 = arith.constant 0 : index
    %6 = vector.load %arg3[%c0_3, %c0_4] : memref<1280x128xbf16, #tpu.memory_space<vmem>>, vector<1280x128xbf16>
    %cst_5 = arith.constant dense<0.000000e+00> : vector<2x128xf32>
    %7 = tpu.matmul %5, %6, %cst_5 {dimension_numbers = #tpu.dot_dimension_numbers<[1], [0], [0], [1], [0, 0, 1, 1], [], []>} : vector<2x1280xbf16>, vector<1280x128xbf16>, vector<2x128xf32> -> vector<2x128xf32>
    %c0_6 = arith.constant 0 : index
    %c0_7 = arith.constant 0 : index
    %8 = vector.load %arg2[%c0_6, %c0_7] : memref<2x768xbf16, #tpu.memory_space<vmem>>, vector<2x768xbf16>
    %c0_8 = arith.constant 0 : index
    %c0_9 = arith.constant 0 : index
    %9 = vector.load %arg4[%c0_8, %c0_9] : memref<768x128xbf16, #tpu.memory_space<vmem>>, vector<768x128xbf16>
    %cst_10 = arith.constant dense<0.000000e+00> : vector<2x128xf32>
    %10 = tpu.matmul %8, %9, %cst_10 {dimension_numbers = #tpu.dot_dimension_numbers<[1], [0], [0], [1], [0, 0, 1, 1], [], []>} : vector<2x768xbf16>, vector<768x128xbf16>, vector<2x128xf32> -> vector<2x128xf32>
    %11 = arith.addf %7, %10 : vector<2x128xf32>
    %c0_11 = arith.constant 0 : index
    %c0_12 = arith.constant 0 : index
    %12 = vector.load %arg5[%c0_11, %c0_12] : memref<1x128xf32, #tpu.memory_space<vmem>>, vector<1x128xf32>
    %13 = vector.broadcast %12 : vector<1x128xf32> to vector<2x128xf32>
    %14 = arith.addf %11, %13 : vector<2x128xf32>
    %c0_13 = arith.constant 0 : index
    %c0_14 = arith.constant 0 : index
    %15 = vector.load %arg6[%c0_13, %c0_14] : memref<2x128xf32, #tpu.memory_space<vmem>>, vector<2x128xf32>
    tpu.vector_store %arg6[%c0_13, %c0_14], %14 {strides = array<i32>} : memref<2x128xf32, #tpu.memory_space<vmem>>, vector<2x128xf32>,
    return
  }
  func.func @transform_0(%arg0: i32) -> (i32, i32, i32) {
    %c0_i32 = arith.constant 0 : i32
    %c0_i32_0 = arith.constant 0 : i32
    %c0_i32_1 = arith.constant 0 : i32
    return %arg0, %c0_i32, %c0_i32_0 : i32, i32, i32
  }
  func.func @transform_1(%arg0: i32) -> (i32, i32) {
    %c0_i32 = arith.constant 0 : i32
    %c0_i32_0 = arith.constant 0 : i32
    return %arg0, %c0_i32 : i32, i32
  }
  func.func @transform_2(%arg0: i32) -> (i32, i32) {
    %c0_i32 = arith.constant 0 : i32
    %c0_i32_0 = arith.constant 0 : i32
    %c0_i32_1 = arith.constant 0 : i32
    return %c0_i32, %c0_i32_0 : i32, i32
  }
  func.func @transform_3(%arg0: i32) -> (i32, i32) {
    %c0_i32 = arith.constant 0 : i32
    %c0_i32_0 = arith.constant 0 : i32
    %c0_i32_1 = arith.constant 0 : i32
    return %c0_i32, %c0_i32_0 : i32, i32
  }
  func.func @transform_4(%arg0: i32) -> (i32, i32) {
    %c0_i32 = arith.constant 0 : i32
    %c0_i32_0 = arith.constant 0 : i32
    %c0_i32_1 = arith.constant 0 : i32
    return %c0_i32, %c0_i32_0 : i32, i32
  }
  func.func @transform_5(%arg0: i32) -> (i32, i32) {
    %c0_i32 = arith.constant 0 : i32
    %c0_i32_0 = arith.constant 0 : i32
    return %arg0, %c0_i32 : i32, i32
  }
}

</mosaic_0001>

<llo_original>
// kernel: _lambda_.1
$region0: #{_lambda_.1}
  #allocation0 [shape = 'u32[]', space=smem, size = 0x4, offset = 0x4, fixed_abs, tag = 'smem constant byte address 0x4 - core index']
  #allocation1 [shape = 'u32[144,128]{1,0:T(1,128)}', space=vmem, size = 0x12000, scoped, tag = 'internal scratch']
  %s0 = inlined_call_operand.vmem [shape: bf16[2,16,1280], index: 0, kind: input, shape index: {}]
  %s1 = inlined_call_operand.vmem [shape: bf16[2,768], index: 1, kind: input, shape index: {}]
  %s2 = inlined_call_operand.hbm [shape: bf16[1280,128], index: 2, kind: input, shape index: {}]
  %s3 = inlined_call_operand.hbm [shape: bf16[768,128], index: 3, kind: input, shape index: {}]
  %s4 = inlined_call_operand.vmem [shape: f32[1,128], index: 4, kind: input, shape index: {}]
  %s5 = inlined_call_operand.hbm [shape: f32[2,128], index: 5, kind: output, shape index: {}]
  %s6 = sld [smem:[#allocation0]]
  $region38: #{_lambda_.1} parent=0
    _
  %s8 = ssub.s32 1, %s6
  %s9 = scalar_select 0, %s8, %s6
  $region1: #{_lambda_.1} parent=0
    #allocation2 [shape = 'u8[327680]{0}', space=vmem, size = 0x50000, scoped, tag = 'input window, operand 2, single buffered']
    #allocation3 [shape = 's32[1]{0}', space=sflag, size = 0x4, scoped, tag = 'scoped memory for _lambda_.1']
    #allocation4 [shape = 's32[1]{0}', space=sflag, size = 0x4, scoped, tag = 'scoped memory for _lambda_.1']
    #allocation5 [shape = 'u8[196608]{0}', space=vmem, size = 0x30000, scoped, tag = 'input window, operand 3, single buffered']
    #allocation6 [shape = 's32[1]{0}', space=sflag, size = 0x4, scoped, tag = 'scoped memory for _lambda_.1']
    #allocation7 [shape = 'u8[1024]{0}', space=vmem, size = 0x400, scoped, tag = 'output window, operand 0, single buffered']
    %10 = vsyncpa [#allocation3], 0
    %11 = vsyncpa [#allocation6], 0
    %12 = vsyncpa [#allocation4], 0
    // Predicated region
    $region2: #{_lambda_.1} parent=1 // pred_check
      _
    $region3: #{_lambda_.1} parent=1 // pred_check_branch
      %14 = sbr.rel (0) target = $region5
    $region4: #{_lambda_.1} parent=1 // pred_region
      _
    $region5: #{_lambda_.1} parent=1 // pred_fallthru
      _
    // Predicated region
    $region6: #{_lambda_.1} parent=1 // pred_check
      _
    $region7: #{_lambda_.1} parent=1 // pred_check_branch
      %16 = sbr.rel (0) target = $region9
    $region8: #{_lambda_.1} parent=1 // pred_region
      _
    $region9: #{_lambda_.1} parent=1 // pred_fallthru
      _
    // Predicated region
    $region10: #{_lambda_.1} parent=1 // pred_check
      _
    $region11: #{_lambda_.1} parent=1 // pred_check_branch
      %18 = sbr.rel (0) target = $region13
    $region12: #{_lambda_.1} parent=1 // pred_region
      %s20 = ssub.s32 10240, 10240
      %21 = vsyncadd [#allocation3], %s20
      %s22 = sshll.u32 [#allocation2], 4
      %s23 = int_to_ptr.vmem [resolvable:$true] %s22
      %28 = dma.hbm_to_vmem [thread:$0]  %s2, 10240, %s23, [#allocation3], 64, 64, 4
    $region13: #{_lambda_.1} parent=1 // pred_fallthru
      _
    // Predicated region
    $region14: #{_lambda_.1} parent=1 // pred_check
      _
    $region15: #{_lambda_.1} parent=1 // pred_check_branch
      %30 = sbr.rel (0) target = $region17
    $region16: #{_lambda_.1} parent=1 // pred_region
      %s32 = ssub.s32 6144, 6144
      %33 = vsyncadd [#allocation6], %s32
      %s34 = sshll.u32 [#allocation5], 4
      %s35 = int_to_ptr.vmem [resolvable:$true] %s34
      %40 = dma.hbm_to_vmem [thread:$0]  %s3, 6144, %s35, [#allocation6], 64, 64, 4
    $region17: #{_lambda_.1} parent=1 // pred_fallthru
      _
    // Predicated region
    $region18: #{_lambda_.1} parent=1 // pred_check
      _
    $region19: #{_lambda_.1} parent=1 // pred_check_branch
      %42 = sbr.rel (0) target = $region21
    $region20: #{_lambda_.1} parent=1 // pred_region
      _
    $region21: #{_lambda_.1} parent=1 // pred_fallthru
      _
    // Predicated region
    $region22: #{_lambda_.1} parent=1 // pred_check
      _
    $region23: #{_lambda_.1} parent=1 // pred_check_branch
      %44 = sbr.rel (0) target = $region25
    $region24: #{_lambda_.1} parent=1 // pred_region
      %45 = dma.done [#allocation3], 10240
    $region25: #{_lambda_.1} parent=1 // pred_fallthru
      _
    // Predicated region
    $region26: #{_lambda_.1} parent=1 // pred_check
      _
    $region27: #{_lambda_.1} parent=1 // pred_check_branch
      %47 = sbr.rel (0) target = $region29
    $region28: #{_lambda_.1} parent=1 // pred_region
      %48 = dma.done [#allocation6], 6144
    $region29: #{_lambda_.1} parent=1 // pred_fallthru
      _
    %v50 = vld [vmem:[%s0] sm:$0xff]
    %v51 = vld [vmem:[%s0 + $0x8] sm:$0xff]
    %v52 = vld [vmem:[%s0 + $0x10] sm:$0xff]
    %v53 = vld [vmem:[%s0 + $0x18] sm:$0xff]
    %v54 = vld [vmem:[%s0 + $0x20] sm:$0xff]
    %v55 = vld [vmem:[%s0 + $0x28] sm:$0xff]
    %v56 = vld [vmem:[%s0 + $0x30] sm:$0xff]
    %v57 = vld [vmem:[%s0 + $0x38] sm:$0xff]
    %v58 = vld [vmem:[%s0 + $0x40] sm:$0xff]
    %v59 = vld [vmem:[%s0 + $0x48] sm:$0xff]
    %v60 = vld [vmem:[%s0 + $0x50] sm:$0xff]
    %v61 = vld [vmem:[%s0 + $0x58] sm:$0xff]
    %v62 = vld [vmem:[%s0 + $0x60] sm:$0xff]
    %v63 = vld [vmem:[%s0 + $0x68] sm:$0xff]
    %v64 = vld [vmem:[%s0 + $0x70] sm:$0xff]
    %v65 = vld [vmem:[%s0 + $0x78] sm:$0xff]
    %v66 = vld [vmem:[%s0 + $0x80] sm:$0xff]
    %v67 = vld [vmem:[%s0 + $0x88] sm:$0xff]
    %v68 = vld [vmem:[%s0 + $0x90] sm:$0xff]
    %v69 = vld [vmem:[%s0 + $0x98] sm:$0xff]
    %v70 = vunpack.c.l.bf16 %v50
    %v71 = vunpack.c.h.bf16 %v50
    %v72 = vunpack.c.l.bf16 %v51
    %v73 = vunpack.c.h.bf16 %v51
    %v74 = vunpack.c.l.bf16 %v52
    %v75 = vunpack.c.h.bf16 %v52
    %v76 = vunpack.c.l.bf16 %v53
    %v77 = vunpack.c.h.bf16 %v53
    %v78 = vunpack.c.l.bf16 %v54
    %v79 = vunpack.c.h.bf16 %v54
    %v80 = vunpack.c.l.bf16 %v55
    %v81 = vunpack.c.h.bf16 %v55
    %v82 = vunpack.c.l.bf16 %v56
    %v83 = vunpack.c.h.bf16 %v56
    %v84 = vunpack.c.l.bf16 %v57
    %v85 = vunpack.c.h.bf16 %v57
    %v86 = vunpack.c.l.bf16 %v58
    %v87 = vunpack.c.h.bf16 %v58
    %v88 = vunpack.c.l.bf16 %v59
    %v89 = vunpack.c.h.bf16 %v59
    %v90 = vunpack.c.l.bf16 %v60
    %v91 = vunpack.c.h.bf16 %v60
    %v92 = vunpack.c.l.bf16 %v61
    %v93 = vunpack.c.h.bf16 %v61
    %v94 = vunpack.c.l.bf16 %v62
    %v95 = vunpack.c.h.bf16 %v62
    %v96 = vunpack.c.l.bf16 %v63
    %v97 = vunpack.c.h.bf16 %v63
    %v98 = vunpack.c.l.bf16 %v64
    %v99 = vunpack.c.h.bf16 %v64
    %v100 = vunpack.c.l.bf16 %v65
    %v101 = vunpack.c.h.bf16 %v65
    %v102 = vunpack.c.l.bf16 %v66
    %v103 = vunpack.c.h.bf16 %v66
    %v104 = vunpack.c.l.bf16 %v67
    %v105 = vunpack.c.h.bf16 %v67
    %v106 = vunpack.c.l.bf16 %v68
    %v107 = vunpack.c.h.bf16 %v68
    %v108 = vunpack.c.l.bf16 %v69
    %v109 = vunpack.c.h.bf16 %v69
    %v110 = vadd.f32 %v70, %v80
    %v111 = vrot.slane %v110, 4
    %v112 = vadd.f32 %v110, %v111
    %v113 = vrot.slane %v112, 2
    %v114 = vadd.f32 %v112, %v113
    %v115 = vrot.slane %v114, 1
    %v116 = vadd.f32 %v114, %v115
    %v117 = vadd.f32 %v71, %v81
    %v118 = vrot.slane %v117, 4
    %v119 = vadd.f32 %v117, %v118
    %v120 = vrot.slane %v119, 2
    %v121 = vadd.f32 %v119, %v120
    %v122 = vrot.slane %v121, 1
    %v123 = vadd.f32 %v121, %v122
    %v124 = vadd.f32 %v72, %v82
    %v125 = vrot.slane %v124, 4
    %v126 = vadd.f32 %v124, %v125
    %v127 = vrot.slane %v126, 2
    %v128 = vadd.f32 %v126, %v127
    %v129 = vrot.slane %v128, 1
    %v130 = vadd.f32 %v128, %v129
    %v131 = vadd.f32 %v73, %v83
    %v132 = vrot.slane %v131, 4
    %v133 = vadd.f32 %v131, %v132
    %v134 = vrot.slane %v133, 2
    %v135 = vadd.f32 %v133, %v134
    %v136 = vrot.slane %v135, 1
    %v137 = vadd.f32 %v135, %v136
    %v138 = vadd.f32 %v74, %v84
    %v139 = vrot.slane %v138, 4
    %v140 = vadd.f32 %v138, %v139
    %v141 = vrot.slane %v140, 2
    %v142 = vadd.f32 %v140, %v141
    %v143 = vrot.slane %v142, 1
    %v144 = vadd.f32 %v142, %v143
    %v145 = vadd.f32 %v75, %v85
    %v146 = vrot.slane %v145, 4
    %v147 = vadd.f32 %v145, %v146
    %v148 = vrot.slane %v147, 2
    %v149 = vadd.f32 %v147, %v148
    %v150 = vrot.slane %v149, 1
    %v151 = vadd.f32 %v149, %v150
    %v152 = vadd.f32 %v76, %v86
    %v153 = vrot.slane %v152, 4
    %v154 = vadd.f32 %v152, %v153
    %v155 = vrot.slane %v154, 2
    %v156 = vadd.f32 %v154, %v155
    %v157 = vrot.slane %v156, 1
    %v158 = vadd.f32 %v156, %v157
    %v159 = vadd.f32 %v77, %v87
    %v160 = vrot.slane %v159, 4
    %v161 = vadd.f32 %v159, %v160
    %v162 = vrot.slane %v161, 2
    %v163 = vadd.f32 %v161, %v162
    %v164 = vrot.slane %v163, 1
    %v165 = vadd.f32 %v163, %v164
    %v166 = vadd.f32 %v78, %v88
    %v167 = vrot.slane %v166, 4
    %v168 = vadd.f32 %v166, %v167
    %v169 = vrot.slane %v168, 2
    %v170 = vadd.f32 %v168, %v169
    %v171 = vrot.slane %v170, 1
    %v172 = vadd.f32 %v170, %v171
    %v173 = vadd.f32 %v79, %v89
    %v174 = vrot.slane %v173, 4
    %v175 = vadd.f32 %v173, %v174
    %v176 = vrot.slane %v175, 2
    %v177 = vadd.f32 %v175, %v176
    %v178 = vrot.slane %v177, 1
    %v179 = vadd.f32 %v177, %v178
    %v180 = vadd.f32 %v90, %v100
    %v181 = vrot.slane %v180, 4
    %v182 = vadd.f32 %v180, %v181
    %v183 = vrot.slane %v182, 2
    %v184 = vadd.f32 %v182, %v183
    %v185 = vrot.slane %v184, 1
    %v186 = vadd.f32 %v184, %v185
    %v187 = vadd.f32 %v91, %v101
    %v188 = vrot.slane %v187, 4
    %v189 = vadd.f32 %v187, %v188
    %v190 = vrot.slane %v189, 2
    %v191 = vadd.f32 %v189, %v190
    %v192 = vrot.slane %v191, 1
    %v193 = vadd.f32 %v191, %v192
    %v194 = vadd.f32 %v92, %v102
    %v195 = vrot.slane %v194, 4
    %v196 = vadd.f32 %v194, %v195
    %v197 = vrot.slane %v196, 2
    %v198 = vadd.f32 %v196, %v197
    %v199 = vrot.slane %v198, 1
    %v200 = vadd.f32 %v198, %v199
    %v201 = vadd.f32 %v93, %v103
    %v202 = vrot.slane %v201, 4
    %v203 = vadd.f32 %v201, %v202
    %v204 = vrot.slane %v203, 2
    %v205 = vadd.f32 %v203, %v204
    %v206 = vrot.slane %v205, 1
    %v207 = vadd.f32 %v205, %v206
    %v208 = vadd.f32 %v94, %v104
    %v209 = vrot.slane %v208, 4
    %v210 = vadd.f32 %v208, %v209
    %v211 = vrot.slane %v210, 2
    %v212 = vadd.f32 %v210, %v211
    %v213 = vrot.slane %v212, 1
    %v214 = vadd.f32 %v212, %v213
    %v215 = vadd.f32 %v95, %v105
    %v216 = vrot.slane %v215, 4
    %v217 = vadd.f32 %v215, %v216
    %v218 = vrot.slane %v217, 2
    %v219 = vadd.f32 %v217, %v218
    %v220 = vrot.slane %v219, 1
    %v221 = vadd.f32 %v219, %v220
    %v222 = vadd.f32 %v96, %v106
    %v223 = vrot.slane %v222, 4
    %v224 = vadd.f32 %v222, %v223
    %v225 = vrot.slane %v224, 2
    %v226 = vadd.f32 %v224, %v225
    %v227 = vrot.slane %v226, 1
    %v228 = vadd.f32 %v226, %v227
    %v229 = vadd.f32 %v97, %v107
    %v230 = vrot.slane %v229, 4
    %v231 = vadd.f32 %v229, %v230
    %v232 = vrot.slane %v231, 2
    %v233 = vadd.f32 %v231, %v232
    %v234 = vrot.slane %v233, 1
    %v235 = vadd.f32 %v233, %v234
    %v236 = vadd.f32 %v98, %v108
    %v237 = vrot.slane %v236, 4
    %v238 = vadd.f32 %v236, %v237
    %v239 = vrot.slane %v238, 2
    %v240 = vadd.f32 %v238, %v239
    %v241 = vrot.slane %v240, 1
    %v242 = vadd.f32 %v240, %v241
    %v243 = vadd.f32 %v99, %v109
    %v244 = vrot.slane %v243, 4
    %v245 = vadd.f32 %v243, %v244
    %v246 = vrot.slane %v245, 2
    %v247 = vadd.f32 %v245, %v246
    %v248 = vrot.slane %v247, 1
    %v249 = vadd.f32 %v247, %v248
    %v250 = vrcp.pop 16.0
    %v251 = vmul.f32 %v116, %v250
    %v252 = vmul.f32 %v123, %v250
    %v253 = vmul.f32 %v130, %v250
    %v254 = vmul.f32 %v137, %v250
    %v255 = vmul.f32 %v144, %v250
    %v256 = vmul.f32 %v151, %v250
    %v257 = vmul.f32 %v158, %v250
    %v258 = vmul.f32 %v165, %v250
    %v259 = vmul.f32 %v172, %v250
    %v260 = vmul.f32 %v179, %v250
    %v261 = vmul.f32 %v186, %v250
    %v262 = vmul.f32 %v193, %v250
    %v263 = vmul.f32 %v200, %v250
    %v264 = vmul.f32 %v207, %v250
    %v265 = vmul.f32 %v214, %v250
    %v266 = vmul.f32 %v221, %v250
    %v267 = vmul.f32 %v228, %v250
    %v268 = vmul.f32 %v235, %v250
    %v269 = vmul.f32 %v242, %v250
    %v270 = vmul.f32 %v249, %v250
    %v271 = vpack.c.bf16 %v251, %v251
    %v272 = vpack.c.bf16 %v252, %v252
    %v273 = vpack.c.bf16 %v253, %v253
    %v274 = vpack.c.bf16 %v254, %v254
    %v275 = vpack.c.bf16 %v255, %v255
    %v276 = vpack.c.bf16 %v256, %v256
    %v277 = vpack.c.bf16 %v257, %v257
    %v278 = vpack.c.bf16 %v258, %v258
    %v279 = vpack.c.bf16 %v259, %v259
    %v280 = vpack.c.bf16 %v260, %v260
    %v281 = vpack.c.bf16 %v261, %v261
    %v282 = vpack.c.bf16 %v262, %v262
    %v283 = vpack.c.bf16 %v263, %v263
    %v284 = vpack.c.bf16 %v264, %v264
    %v285 = vpack.c.bf16 %v265, %v265
    %v286 = vpack.c.bf16 %v266, %v266
    %v287 = vpack.c.bf16 %v267, %v267
    %v288 = vpack.c.bf16 %v268, %v268
    %v289 = vpack.c.bf16 %v269, %v269
    %v290 = vpack.c.bf16 %v270, %v270
    %v291 = vld [vmem:[#allocation2] sm:$0xf]
    %v292 = vld [vmem:[#allocation2 + $0x4] sm:$0xf]
    %v293 = vld [vmem:[#allocation2 + $0x8] sm:$0xf]
    %v294 = vld [vmem:[#allocation2 + $0xc] sm:$0xf]
    %v295 = vld [vmem:[#allocation2 + $0x10] sm:$0xf]
    %v296 = vld [vmem:[#allocation2 + $0x14] sm:$0xf]
    %v297 = vld [vmem:[#allocation2 + $0x18] sm:$0xf]
    %v298 = vld [vmem:[#allocation2 + $0x1c] sm:$0xf]
    %v299 = vld [vmem:[#allocation2 + $0x20] sm:$0xf]
    %v300 = vld [vmem:[#allocation2 + $0x24] sm:$0xf]
    %v301 = vld [vmem:[#allocation2 + $0x28] sm:$0xf]
    %v302 = vld [vmem:[#allocation2 + $0x2c] sm:$0xf]
    %v303 = vld [vmem:[#allocation2 + $0x30] sm:$0xf]
    %v304 = vld [vmem:[#allocation2 + $0x34] sm:$0xf]
    %v305 = vld [vmem:[#allocation2 + $0x38] sm:$0xf]
    %v306 = vld [vmem:[#allocation2 + $0x3c] sm:$0xf]
    %v307 = vld [vmem:[#allocation2 + $0x40] sm:$0xf]
    %v308 = vld [vmem:[#allocation2 + $0x44] sm:$0xf]
    %v309 = vld [vmem:[#allocation2 + $0x48] sm:$0xf]
    %v310 = vld [vmem:[#allocation2 + $0x4c] sm:$0xf]
    %v311 = vld [vmem:[#allocation2 + $0x50] sm:$0xf]
    %v312 = vld [vmem:[#allocation2 + $0x54] sm:$0xf]
    %v313 = vld [vmem:[#allocation2 + $0x58] sm:$0xf]
    %v314 = vld [vmem:[#allocation2 + $0x5c] sm:$0xf]
    %v315 = vld [vmem:[#allocation2 + $0x60] sm:$0xf]
    %v316 = vld [vmem:[#allocation2 + $0x64] sm:$0xf]
    %v317 = vld [vmem:[#allocation2 + $0x68] sm:$0xf]
    %v318 = vld [vmem:[#allocation2 + $0x6c] sm:$0xf]
    %v319 = vld [vmem:[#allocation2 + $0x70] sm:$0xf]
    %v320 = vld [vmem:[#allocation2 + $0x74] sm:$0xf]
    %v321 = vld [vmem:[#allocation2 + $0x78] sm:$0xf]
    %v322 = vld [vmem:[#allocation2 + $0x7c] sm:$0xf]
    %v323 = vld [vmem:[#allocation2 + $0x80] sm:$0xf]
    %v324 = vld [vmem:[#allocation2 + $0x84] sm:$0xf]
    %v325 = vld [vmem:[#allocation2 + $0x88] sm:$0xf]
    %v326 = vld [vmem:[#allocation2 + $0x8c] sm:$0xf]
    %v327 = vld [vmem:[#allocation2 + $0x90] sm:$0xf]
    %v328 = vld [vmem:[#allocation2 + $0x94] sm:$0xf]
    %v329 = vld [vmem:[#allocation2 + $0x98] sm:$0xf]
    %v330 = vld [vmem:[#allocation2 + $0x9c] sm:$0xf]
    %v331 = vld [vmem:[#allocation2 + $0xa0] sm:$0xf]
    %v332 = vld [vmem:[#allocation2 + $0xa4] sm:$0xf]
    %v333 = vld [vmem:[#allocation2 + $0xa8] sm:$0xf]
    %v334 = vld [vmem:[#allocation2 + $0xac] sm:$0xf]
    %v335 = vld [vmem:[#allocation2 + $0xb0] sm:$0xf]
    %v336 = vld [vmem:[#allocation2 + $0xb4] sm:$0xf]
    %v337 = vld [vmem:[#allocation2 + $0xb8] sm:$0xf]
    %v338 = vld [vmem:[#allocation2 + $0xbc] sm:$0xf]
    %v339 = vld [vmem:[#allocation2 + $0xc0] sm:$0xf]
    %v340 = vld [vmem:[#allocation2 + $0xc4] sm:$0xf]
    %v341 = vld [vmem:[#allocation2 + $0xc8] sm:$0xf]
    %v342 = vld [vmem:[#allocation2 + $0xcc] sm:$0xf]
    %v343 = vld [vmem:[#allocation2 + $0xd0] sm:$0xf]
    %v344 = vld [vmem:[#allocation2 + $0xd4] sm:$0xf]
    %v345 = vld [vmem:[#allocation2 + $0xd8] sm:$0xf]
    %v346 = vld [vmem:[#allocation2 + $0xdc] sm:$0xf]
    %v347 = vld [vmem:[#allocation2 + $0xe0] sm:$0xf]
    %v348 = vld [vmem:[#allocation2 + $0xe4] sm:$0xf]
    %v349 = vld [vmem:[#allocation2 + $0xe8] sm:$0xf]
    %v350 = vld [vmem:[#allocation2 + $0xec] sm:$0xf]
    %v351 = vld [vmem:[#allocation2 + $0xf0] sm:$0xf]
    %v352 = vld [vmem:[#allocation2 + $0xf4] sm:$0xf]
    %v353 = vld [vmem:[#allocation2 + $0xf8] sm:$0xf]
    %v354 = vld [vmem:[#allocation2 + $0xfc] sm:$0xf]
    %v355 = vld [vmem:[#allocation2 + $0x100] sm:$0xf]
    %v356 = vld [vmem:[#allocation2 + $0x104] sm:$0xf]
    %v357 = vld [vmem:[#allocation2 + $0x108] sm:$0xf]
    %v358 = vld [vmem:[#allocation2 + $0x10c] sm:$0xf]
    %v359 = vld [vmem:[#allocation2 + $0x110] sm:$0xf]
    %v360 = vld [vmem:[#allocation2 + $0x114] sm:$0xf]
    %v361 = vld [vmem:[#allocation2 + $0x118] sm:$0xf]
    %v362 = vld [vmem:[#allocation2 + $0x11c] sm:$0xf]
    %v363 = vld [vmem:[#allocation2 + $0x120] sm:$0xf]
    %v364 = vld [vmem:[#allocation2 + $0x124] sm:$0xf]
    %v365 = vld [vmem:[#allocation2 + $0x128] sm:$0xf]
    %v366 = vld [vmem:[#allocation2 + $0x12c] sm:$0xf]
    %v367 = vld [vmem:[#allocation2 + $0x130] sm:$0xf]
    %v368 = vld [vmem:[#allocation2 + $0x134] sm:$0xf]
    %v369 = vld [vmem:[#allocation2 + $0x138] sm:$0xf]
    %v370 = vld [vmem:[#allocation2 + $0x13c] sm:$0xf]
    %v371 = vld [vmem:[#allocation2 + $0x140] sm:$0xf]
    %v372 = vld [vmem:[#allocation2 + $0x144] sm:$0xf]
    %v373 = vld [vmem:[#allocation2 + $0x148] sm:$0xf]
    %v374 = vld [vmem:[#allocation2 + $0x14c] sm:$0xf]
    %v375 = vld [vmem:[#allocation2 + $0x150] sm:$0xf]
    %v376 = vld [vmem:[#allocation2 + $0x154] sm:$0xf]
    %v377 = vld [vmem:[#allocation2 + $0x158] sm:$0xf]
    %v378 = vld [vmem:[#allocation2 + $0x15c] sm:$0xf]
    %v379 = vld [vmem:[#allocation2 + $0x160] sm:$0xf]
    %v380 = vld [vmem:[#allocation2 + $0x164] sm:$0xf]
    %v381 = vld [vmem:[#allocation2 + $0x168] sm:$0xf]
    %v382 = vld [vmem:[#allocation2 + $0x16c] sm:$0xf]
    %v383 = vld [vmem:[#allocation2 + $0x170] sm:$0xf]
    %v384 = vld [vmem:[#allocation2 + $0x174] sm:$0xf]
    %v385 = vld [vmem:[#allocation2 + $0x178] sm:$0xf]
    %v386 = vld [vmem:[#allocation2 + $0x17c] sm:$0xf]
    %v387 = vld [vmem:[#allocation2 + $0x180] sm:$0xf]
    %v388 = vld [vmem:[#allocation2 + $0x184] sm:$0xf]
    %v389 = vld [vmem:[#allocation2 + $0x188] sm:$0xf]
    %v390 = vld [vmem:[#allocation2 + $0x18c] sm:$0xf]
    %v391 = vld [vmem:[#allocation2 + $0x190] sm:$0xf]
    %v392 = vld [vmem:[#allocation2 + $0x194] sm:$0xf]
    %v393 = vld [vmem:[#allocation2 + $0x198] sm:$0xf]
    %v394 = vld [vmem:[#allocation2 + $0x19c] sm:$0xf]
    %v395 = vld [vmem:[#allocation2 + $0x1a0] sm:$0xf]
    %v396 = vld [vmem:[#allocation2 + $0x1a4] sm:$0xf]
    %v397 = vld [vmem:[#allocation2 + $0x1a8] sm:$0xf]
    %v398 = vld [vmem:[#allocation2 + $0x1ac] sm:$0xf]
    %v399 = vld [vmem:[#allocation2 + $0x1b0] sm:$0xf]
    %v400 = vld [vmem:[#allocation2 + $0x1b4] sm:$0xf]
    %v401 = vld [vmem:[#allocation2 + $0x1b8] sm:$0xf]
    %v402 = vld [vmem:[#allocation2 + $0x1bc] sm:$0xf]
    %v403 = vld [vmem:[#allocation2 + $0x1c0] sm:$0xf]
    %v404 = vld [vmem:[#allocation2 + $0x1c4] sm:$0xf]
    %v405 = vld [vmem:[#allocation2 + $0x1c8] sm:$0xf]
    %v406 = vld [vmem:[#allocation2 + $0x1cc] sm:$0xf]
    %v407 = vld [vmem:[#allocation2 + $0x1d0] sm:$0xf]
    %v408 = vld [vmem:[#allocation2 + $0x1d4] sm:$0xf]
    %v409 = vld [vmem:[#allocation2 + $0x1d8] sm:$0xf]
    %v410 = vld [vmem:[#allocation2 + $0x1dc] sm:$0xf]
    %v411 = vld [vmem:[#allocation2 + $0x1e0] sm:$0xf]
    %v412 = vld [vmem:[#allocation2 + $0x1e4] sm:$0xf]
    %v413 = vld [vmem:[#allocation2 + $0x1e8] sm:$0xf]
    %v414 = vld [vmem:[#allocation2 + $0x1ec] sm:$0xf]
    %v415 = vld [vmem:[#allocation2 + $0x1f0] sm:$0xf]
    %v416 = vld [vmem:[#allocation2 + $0x1f4] sm:$0xf]
    %v417 = vld [vmem:[#allocation2 + $0x1f8] sm:$0xf]
    %v418 = vld [vmem:[#allocation2 + $0x1fc] sm:$0xf]
    %v419 = vld [vmem:[#allocation2 + $0x200] sm:$0xf]
    %v420 = vld [vmem:[#allocation2 + $0x204] sm:$0xf]
    %v421 = vld [vmem:[#allocation2 + $0x208] sm:$0xf]
    %v422 = vld [vmem:[#allocation2 + $0x20c] sm:$0xf]
    %v423 = vld [vmem:[#allocation2 + $0x210] sm:$0xf]
    %v424 = vld [vmem:[#allocation2 + $0x214] sm:$0xf]
    %v425 = vld [vmem:[#allocation2 + $0x218] sm:$0xf]
    %v426 = vld [vmem:[#allocation2 + $0x21c] sm:$0xf]
    %v427 = vld [vmem:[#allocation2 + $0x220] sm:$0xf]
    %v428 = vld [vmem:[#allocation2 + $0x224] sm:$0xf]
    %v429 = vld [vmem:[#allocation2 + $0x228] sm:$0xf]
    %v430 = vld [vmem:[#allocation2 + $0x22c] sm:$0xf]
    %v431 = vld [vmem:[#allocation2 + $0x230] sm:$0xf]
    %v432 = vld [vmem:[#allocation2 + $0x234] sm:$0xf]
    %v433 = vld [vmem:[#allocation2 + $0x238] sm:$0xf]
    %v434 = vld [vmem:[#allocation2 + $0x23c] sm:$0xf]
    %v435 = vld [vmem:[#allocation2 + $0x240] sm:$0xf]
    %v436 = vld [vmem:[#allocation2 + $0x244] sm:$0xf]
    %v437 = vld [vmem:[#allocation2 + $0x248] sm:$0xf]
    %v438 = vld [vmem:[#allocation2 + $0x24c] sm:$0xf]
    %v439 = vld [vmem:[#allocation2 + $0x250] sm:$0xf]
    %v440 = vld [vmem:[#allocation2 + $0x254] sm:$0xf]
    %v441 = vld [vmem:[#allocation2 + $0x258] sm:$0xf]
    %v442 = vld [vmem:[#allocation2 + $0x25c] sm:$0xf]
    %v443 = vld [vmem:[#allocation2 + $0x260] sm:$0xf]
    %v444 = vld [vmem:[#allocation2 + $0x264] sm:$0xf]
    %v445 = vld [vmem:[#allocation2 + $0x268] sm:$0xf]
    %v446 = vld [vmem:[#allocation2 + $0x26c] sm:$0xf]
    %v447 = vld [vmem:[#allocation2 + $0x270] sm:$0xf]
    %v448 = vld [vmem:[#allocation2 + $0x274] sm:$0xf]
    %v449 = vld [vmem:[#allocation2 + $0x278] sm:$0xf]
    %v450 = vld [vmem:[#allocation2 + $0x27c] sm:$0xf]
    %v451 = vld [vmem:[%s1] sm:$0x3f]
    %v452 = vld [vmem:[#allocation5] sm:$0xf]
    %v453 = vld [vmem:[#allocation5 + $0x4] sm:$0xf]
    %v454 = vld [vmem:[#allocation5 + $0x8] sm:$0xf]
    %v455 = vld [vmem:[#allocation5 + $0xc] sm:$0xf]
    %v456 = vld [vmem:[#allocation5 + $0x10] sm:$0xf]
    %v457 = vld [vmem:[#allocation5 + $0x14] sm:$0xf]
    %v458 = vld [vmem:[#allocation5 + $0x18] sm:$0xf]
    %v459 = vld [vmem:[#allocation5 + $0x1c] sm:$0xf]
    %v460 = vld [vmem:[#allocation5 + $0x20] sm:$0xf]
    %v461 = vld [vmem:[#allocation5 + $0x24] sm:$0xf]
    %v462 = vld [vmem:[#allocation5 + $0x28] sm:$0xf]
    %v463 = vld [vmem:[#allocation5 + $0x2c] sm:$0xf]
    %v464 = vld [vmem:[#allocation5 + $0x30] sm:$0xf]
    %v465 = vld [vmem:[#allocation5 + $0x34] sm:$0xf]
    %v466 = vld [vmem:[#allocation5 + $0x38] sm:$0xf]
    %v467 = vld [vmem:[#allocation5 + $0x3c] sm:$0xf]
    %v468 = vld [vmem:[#allocation5 + $0x40] sm:$0xf]
    %v469 = vld [vmem:[#allocation5 + $0x44] sm:$0xf]
    %v470 = vld [vmem:[#allocation5 + $0x48] sm:$0xf]
    %v471 = vld [vmem:[#allocation5 + $0x4c] sm:$0xf]
    %v472 = vld [vmem:[#allocation5 + $0x50] sm:$0xf]
    %v473 = vld [vmem:[#allocation5 + $0x54] sm:$0xf]
    %v474 = vld [vmem:[#allocation5 + $0x58] sm:$0xf]
    %v475 = vld [vmem:[#allocation5 + $0x5c] sm:$0xf]
    %v476 = vld [vmem:[#allocation5 + $0x60] sm:$0xf]
    %v477 = vld [vmem:[#allocation5 + $0x64] sm:$0xf]
    %v478 = vld [vmem:[#allocation5 + $0x68] sm:$0xf]
    %v479 = vld [vmem:[#allocation5 + $0x6c] sm:$0xf]
    %v480 = vld [vmem:[#allocation5 + $0x70] sm:$0xf]
    %v481 = vld [vmem:[#allocation5 + $0x74] sm:$0xf]
    %v482 = vld [vmem:[#allocation5 + $0x78] sm:$0xf]
    %v483 = vld [vmem:[#allocation5 + $0x7c] sm:$0xf]
    %v484 = vld [vmem:[#allocation5 + $0x80] sm:$0xf]
    %v485 = vld [vmem:[#allocation5 + $0x84] sm:$0xf]
    %v486 = vld [vmem:[#allocation5 + $0x88] sm:$0xf]
    %v487 = vld [vmem:[#allocation5 + $0x8c] sm:$0xf]
    %v488 = vld [vmem:[#allocation5 + $0x90] sm:$0xf]
    %v489 = vld [vmem:[#allocation5 + $0x94] sm:$0xf]
    %v490 = vld [vmem:[#allocation5 + $0x98] sm:$0xf]
    %v491 = vld [vmem:[#allocation5 + $0x9c] sm:$0xf]
    %v492 = vld [vmem:[#allocation5 + $0xa0] sm:$0xf]
    %v493 = vld [vmem:[#allocation5 + $0xa4] sm:$0xf]
    %v494 = vld [vmem:[#allocation5 + $0xa8] sm:$0xf]
    %v495 = vld [vmem:[#allocation5 + $0xac] sm:$0xf]
    %v496 = vld [vmem:[#allocation5 + $0xb0] sm:$0xf]
    %v497 = vld [vmem:[#allocation5 + $0xb4] sm:$0xf]
    %v498 = vld [vmem:[#allocation5 + $0xb8] sm:$0xf]
    %v499 = vld [vmem:[#allocation5 + $0xbc] sm:$0xf]
    %v500 = vld [vmem:[#allocation5 + $0xc0] sm:$0xf]
    %v501 = vld [vmem:[#allocation5 + $0xc4] sm:$0xf]
    %v502 = vld [vmem:[#allocation5 + $0xc8] sm:$0xf]
    %v503 = vld [vmem:[#allocation5 + $0xcc] sm:$0xf]
    %v504 = vld [vmem:[#allocation5 + $0xd0] sm:$0xf]
    %v505 = vld [vmem:[#allocation5 + $0xd4] sm:$0xf]
    %v506 = vld [vmem:[#allocation5 + $0xd8] sm:$0xf]
    %v507 = vld [vmem:[#allocation5 + $0xdc] sm:$0xf]
    %v508 = vld [vmem:[#allocation5 + $0xe0] sm:$0xf]
    %v509 = vld [vmem:[#allocation5 + $0xe4] sm:$0xf]
    %v510 = vld [vmem:[#allocation5 + $0xe8] sm:$0xf]
    %v511 = vld [vmem:[#allocation5 + $0xec] sm:$0xf]
    %v512 = vld [vmem:[#allocation5 + $0xf0] sm:$0xf]
    %v513 = vld [vmem:[#allocation5 + $0xf4] sm:$0xf]
    %v514 = vld [vmem:[#allocation5 + $0xf8] sm:$0xf]
    %v515 = vld [vmem:[#allocation5 + $0xfc] sm:$0xf]
    %v516 = vld [vmem:[#allocation5 + $0x100] sm:$0xf]
    %v517 = vld [vmem:[#allocation5 + $0x104] sm:$0xf]
    %v518 = vld [vmem:[#allocation5 + $0x108] sm:$0xf]
    %v519 = vld [vmem:[#allocation5 + $0x10c] sm:$0xf]
    %v520 = vld [vmem:[#allocation5 + $0x110] sm:$0xf]
    %v521 = vld [vmem:[#allocation5 + $0x114] sm:$0xf]
    %v522 = vld [vmem:[#allocation5 + $0x118] sm:$0xf]
    %v523 = vld [vmem:[#allocation5 + $0x11c] sm:$0xf]
    %v524 = vld [vmem:[#allocation5 + $0x120] sm:$0xf]
    %v525 = vld [vmem:[#allocation5 + $0x124] sm:$0xf]
    %v526 = vld [vmem:[#allocation5 + $0x128] sm:$0xf]
    %v527 = vld [vmem:[#allocation5 + $0x12c] sm:$0xf]
    %v528 = vld [vmem:[#allocation5 + $0x130] sm:$0xf]
    %v529 = vld [vmem:[#allocation5 + $0x134] sm:$0xf]
    %v530 = vld [vmem:[#allocation5 + $0x138] sm:$0xf]
    %v531 = vld [vmem:[#allocation5 + $0x13c] sm:$0xf]
    %v532 = vld [vmem:[#allocation5 + $0x140] sm:$0xf]
    %v533 = vld [vmem:[#allocation5 + $0x144] sm:$0xf]
    %v534 = vld [vmem:[#allocation5 + $0x148] sm:$0xf]
    %v535 = vld [vmem:[#allocation5 + $0x14c] sm:$0xf]
    %v536 = vld [vmem:[#allocation5 + $0x150] sm:$0xf]
    %v537 = vld [vmem:[#allocation5 + $0x154] sm:$0xf]
    %v538 = vld [vmem:[#allocation5 + $0x158] sm:$0xf]
    %v539 = vld [vmem:[#allocation5 + $0x15c] sm:$0xf]
    %v540 = vld [vmem:[#allocation5 + $0x160] sm:$0xf]
    %v541 = vld [vmem:[#allocation5 + $0x164] sm:$0xf]
    %v542 = vld [vmem:[#allocation5 + $0x168] sm:$0xf]
    %v543 = vld [vmem:[#allocation5 + $0x16c] sm:$0xf]
    %v544 = vld [vmem:[#allocation5 + $0x170] sm:$0xf]
    %v545 = vld [vmem:[#allocation5 + $0x174] sm:$0xf]
    %v546 = vld [vmem:[#allocation5 + $0x178] sm:$0xf]
    %v547 = vld [vmem:[#allocation5 + $0x17c] sm:$0xf]
    %v549 = vcombine.high %v451, %v451
    %v551 = vunpack.c.l.s4 1966171168
    %v552 = vunpack.c.0.s8 %v551
    %v553 = vlaneseq
    %v554 = vshrl.u32 %v553, 7
    %v555 = vsub.s32 %v552, %v554
    %v556 = vrot.slane %v451, %v555
    %v558 = vunpack.c.l.s4 1966171168
    %v559 = vunpack.c.0.s8 %v558
    %v560 = vlaneseq
    %v561 = vshrl.u32 %v560, 7
    %v562 = vsub.s32 %v559, %v561
    %v563 = vrot.slane %v549, %v562
    %v564 = vcombine.high %v556, %v556
    %v565 = vcombine.high %v563, %v563
    %v567 = vunpack.c.l.s4 1966171168
    %v568 = vunpack.c.0.s8 %v567
    %v569 = vlaneseq
    %v570 = vshrl.u32 %v569, 7
    %v571 = vsub.s32 %v568, %v570
    %v572 = vrot.slane %v556, %v571
    %v574 = vunpack.c.l.s4 1966171168
    %v575 = vunpack.c.0.s8 %v574
    %v576 = vlaneseq
    %v577 = vshrl.u32 %v576, 7
    %v578 = vsub.s32 %v575, %v577
    %v579 = vrot.slane %v563, %v578
    %v581 = vunpack.c.l.s4 1966171168
    %v582 = vunpack.c.0.s8 %v581
    %v583 = vlaneseq
    %v584 = vshrl.u32 %v583, 7
    %v585 = vsub.s32 %v582, %v584
    %v586 = vrot.slane %v564, %v585
    %v588 = vunpack.c.l.s4 1966171168
    %v589 = vunpack.c.0.s8 %v588
    %v590 = vlaneseq
    %v591 = vshrl.u32 %v590, 7
    %v592 = vsub.s32 %v589, %v591
    %v593 = vrot.slane %v565, %v592
    %v594 = vcombine.high %v572, %v572
    %v595 = vcombine.high %v586, %v586
    %v698 = vunpack.c.l.b16 %v452
    %v699 = vunpack.c.l.b16 %v453
    %v700 = vunpack.c.l.b16 %v454
    %v701 = vunpack.c.l.b16 %v455
    %v702 = vunpack.c.l.b16 %v456
    %v703 = vunpack.c.l.b16 %v457
    %v704 = vunpack.c.l.b16 %v458
    %v705 = vunpack.c.l.b16 %v459
    %v706 = vunpack.c.l.b16 %v460
    %v707 = vunpack.c.l.b16 %v461
    %v708 = vunpack.c.l.b16 %v462
    %v709 = vunpack.c.l.b16 %v463
    %v710 = vunpack.c.l.b16 %v464
    %v711 = vunpack.c.l.b16 %v465
    %v712 = vunpack.c.l.b16 %v466
    %v713 = vunpack.c.l.b16 %v467
    %v714 = vunpack.c.l.b16 %v468
    %v715 = vunpack.c.l.b16 %v469
    %v716 = vunpack.c.l.b16 %v470
    %v717 = vunpack.c.l.b16 %v471
    %v718 = vunpack.c.l.b16 %v472
    %v719 = vunpack.c.l.b16 %v473
    %v720 = vunpack.c.l.b16 %v474
    %v721 = vunpack.c.l.b16 %v475
    %v722 = vunpack.c.l.b16 %v476
    %v723 = vunpack.c.l.b16 %v477
    %v724 = vunpack.c.l.b16 %v478
    %v725 = vunpack.c.l.b16 %v479
    %v726 = vunpack.c.l.b16 %v480
    %v727 = vunpack.c.l.b16 %v481
    %v728 = vunpack.c.l.b16 %v482
    %v729 = vunpack.c.l.b16 %v483
    %v730 = vunpack.c.l.b16 %v484
    %v731 = vunpack.c.l.b16 %v485
    %v732 = vunpack.c.l.b16 %v486
    %v733 = vunpack.c.l.b16 %v487
    %v734 = vunpack.c.l.b16 %v488
    %v735 = vunpack.c.l.b16 %v489
    %v736 = vunpack.c.l.b16 %v490
    %v737 = vunpack.c.l.b16 %v491
    %v738 = vunpack.c.l.b16 %v492
    %v739 = vunpack.c.l.b16 %v493
    %v740 = vunpack.c.l.b16 %v494
    %v741 = vunpack.c.l.b16 %v495
    %v742 = vunpack.c.l.b16 %v496
    %v743 = vunpack.c.l.b16 %v497
    %v744 = vunpack.c.l.b16 %v498
    %v745 = vunpack.c.l.b16 %v499
    %v746 = vunpack.c.l.b16 %v500
    %v747 = vunpack.c.l.b16 %v501
    %v748 = vunpack.c.l.b16 %v502
    %v749 = vunpack.c.l.b16 %v503
    %v750 = vunpack.c.l.b16 %v504
    %v751 = vunpack.c.l.b16 %v505
    %v752 = vunpack.c.l.b16 %v506
    %v753 = vunpack.c.l.b16 %v507
    %v754 = vunpack.c.l.b16 %v508
    %v755 = vunpack.c.l.b16 %v509
    %v756 = vunpack.c.l.b16 %v510
    %v757 = vunpack.c.l.b16 %v511
    %v758 = vunpack.c.l.b16 %v512
    %v759 = vunpack.c.l.b16 %v513
    %v760 = vunpack.c.l.b16 %v514
    %v761 = vunpack.c.l.b16 %v515
    %v762 = vunpack.c.l.b16 %v516
    %v763 = vunpack.c.l.b16 %v517
    %v764 = vunpack.c.l.b16 %v518
    %v765 = vunpack.c.l.b16 %v519
    %v766 = vunpack.c.l.b16 %v520
    %v767 = vunpack.c.l.b16 %v521
    %v768 = vunpack.c.l.b16 %v522
    %v769 = vunpack.c.l.b16 %v523
    %v770 = vunpack.c.l.b16 %v524
    %v771 = vunpack.c.l.b16 %v525
    %v772 = vunpack.c.l.b16 %v526
    %v773 = vunpack.c.l.b16 %v527
    %v774 = vunpack.c.l.b16 %v528
    %v775 = vunpack.c.l.b16 %v529
    %v776 = vunpack.c.l.b16 %v530
    %v777 = vunpack.c.l.b16 %v531
    %v778 = vunpack.c.l.b16 %v532
    %v779 = vunpack.c.l.b16 %v533
    %v780 = vunpack.c.l.b16 %v534
    %v781 = vunpack.c.l.b16 %v535
    %v782 = vunpack.c.l.b16 %v536
    %v783 = vunpack.c.l.b16 %v537
    %v784 = vunpack.c.l.b16 %v538
    %v785 = vunpack.c.l.b16 %v539
    %v786 = vunpack.c.l.b16 %v540
    %v787 = vunpack.c.l.b16 %v541
    %v788 = vunpack.c.l.b16 %v542
    %v789 = vunpack.c.l.b16 %v543
    %v790 = vunpack.c.l.b16 %v544
    %v791 = vunpack.c.l.b16 %v545
    %v792 = vunpack.c.l.b16 %v546
    %v793 = vunpack.c.l.b16 %v547
    %v794 = vpack.c.b16 %v699, %v698
    %v795 = vpack.c.b16 %v701, %v700
    %v796 = vpack.c.b16 %v703, %v702
    %v797 = vpack.c.b16 %v705, %v704
    %v798 = vpack.c.b16 %v707, %v706
    %v799 = vpack.c.b16 %v709, %v708
    %v800 = vpack.c.b16 %v711, %v710
    %v801 = vpack.c.b16 %v713, %v712
    %v802 = vpack.c.b16 %v715, %v714
    %v803 = vpack.c.b16 %v717, %v716
    %v804 = vpack.c.b16 %v719, %v718
    %v805 = vpack.c.b16 %v721, %v720
    %v806 = vpack.c.b16 %v723, %v722
    %v807 = vpack.c.b16 %v725, %v724
    %v808 = vpack.c.b16 %v727, %v726
    %v809 = vpack.c.b16 %v729, %v728
    %v810 = vpack.c.b16 %v731, %v730
    %v811 = vpack.c.b16 %v733, %v732
    %v812 = vpack.c.b16 %v735, %v734
    %v813 = vpack.c.b16 %v737, %v736
    %v814 = vpack.c.b16 %v739, %v738
    %v815 = vpack.c.b16 %v741, %v740
    %v816 = vpack.c.b16 %v743, %v742
    %v817 = vpack.c.b16 %v745, %v744
    %v818 = vpack.c.b16 %v747, %v746
    %v819 = vpack.c.b16 %v749, %v748
    %v820 = vpack.c.b16 %v751, %v750
    %v821 = vpack.c.b16 %v753, %v752
    %v822 = vpack.c.b16 %v755, %v754
    %v823 = vpack.c.b16 %v757, %v756
    %v824 = vpack.c.b16 %v759, %v758
    %v825 = vpack.c.b16 %v761, %v760
    %v826 = vpack.c.b16 %v763, %v762
    %v827 = vpack.c.b16 %v765, %v764
    %v828 = vpack.c.b16 %v767, %v766
    %v829 = vpack.c.b16 %v769, %v768
    %v830 = vpack.c.b16 %v771, %v770
    %v831 = vpack.c.b16 %v773, %v772
    %v832 = vpack.c.b16 %v775, %v774
    %v833 = vpack.c.b16 %v777, %v776
    %v834 = vpack.c.b16 %v779, %v778
    %v835 = vpack.c.b16 %v781, %v780
    %v836 = vpack.c.b16 %v783, %v782
    %v837 = vpack.c.b16 %v785, %v784
    %v838 = vpack.c.b16 %v787, %v786
    %v839 = vpack.c.b16 %v789, %v788
    %v840 = vpack.c.b16 %v791, %v790
    %v841 = vpack.c.b16 %v793, %v792
    %890 = vmatprep.subr.bf16.mxu0 0
    %891 = vmatpush1.bf16.msra.mxu0 %v794
    %892 = vmatprep.subr.bf16.mxu0 0
    %893 = vmatpush1.bf16.msra.mxu0 %v795
    %894 = vmatprep.subr.bf16.mxu0 0
    %895 = vmatpush1.bf16.msra.mxu0 %v796
    %896 = vmatprep.subr.bf16.mxu0 0
    %897 = vmatpush1.bf16.msra.mxu0 %v797
    %898 = vmatprep.subr.bf16.mxu0 0
    %899 = vmatpush1.bf16.msra.mxu0 %v798
    %900 = vmatprep.subr.bf16.mxu0 0
    %901 = vmatpush1.bf16.msra.mxu0 %v799
    %902 = vmatprep.subr.bf16.mxu0 0
    %903 = vmatpush1.bf16.msra.mxu0 %v800
    %904 = vmatprep.subr.bf16.mxu0 0
    %905 = vmatpush1.bf16.msra.mxu0 %v801
    %906 = vmatprep.subr.bf16.mxu0 0
    %907 = vmatpush1.bf16.msra.mxu0 %v802
    %908 = vmatprep.subr.bf16.mxu0 0
    %909 = vmatpush1.bf16.msra.mxu0 %v803
    %910 = vmatprep.subr.bf16.mxu0 0
    %911 = vmatpush1.bf16.msra.mxu0 %v804
    %912 = vmatprep.subr.bf16.mxu0 0
    %913 = vmatpush1.bf16.msra.mxu0 %v805
    %914 = vmatprep.subr.bf16.mxu0 0
    %915 = vmatpush1.bf16.msra.mxu0 %v806
    %916 = vmatprep.subr.bf16.mxu0 0
    %917 = vmatpush1.bf16.msra.mxu0 %v807
    %918 = vmatprep.subr.bf16.mxu0 0
    %919 = vmatpush1.bf16.msra.mxu0 %v808
    %920 = vmatprep.subr.bf16.mxu0 0
    %921 = vmatpush1.bf16.msra.mxu0 %v809
    %922 = vmatprep.mubr.bf16.mxu0 %v586
    %923 = vmatmul.mubr.bf16.gmra.mrb[0].mxu0 %v572
    %v924 = vpop.f32.mrb[0].mxu0
    %v925 = vadd.f32 0.0, %v924
    %v926 = vpop.f32.mrb[0].mxu0
    %v927 = vpop.f32.mrb[0].mxu0
    %v928 = vpop.f32.mrb[0].mxu0
    %929 = vdwg.mxu0
    %930 = vmatprep.subr.bf16.mxu0 0
    %931 = vmatpush1.bf16.msra.mxu0 %v810
    %932 = vmatprep.subr.bf16.mxu0 0
    %933 = vmatpush1.bf16.msra.mxu0 %v811
    %934 = vmatprep.subr.bf16.mxu0 0
    %935 = vmatpush1.bf16.msra.mxu0 %v812
    %936 = vmatprep.subr.bf16.mxu0 0
    %937 = vmatpush1.bf16.msra.mxu0 %v813
    %938 = vmatprep.subr.bf16.mxu0 0
    %939 = vmatpush1.bf16.msra.mxu0 %v814
    %940 = vmatprep.subr.bf16.mxu0 0
    %941 = vmatpush1.bf16.msra.mxu0 %v815
    %942 = vmatprep.subr.bf16.mxu0 0
    %943 = vmatpush1.bf16.msra.mxu0 %v816
    %944 = vmatprep.subr.bf16.mxu0 0
    %945 = vmatpush1.bf16.msra.mxu0 %v817
    %946 = vmatprep.subr.bf16.mxu0 0
    %947 = vmatpush1.bf16.msra.mxu0 %v818
    %948 = vmatprep.subr.bf16.mxu0 0
    %949 = vmatpush1.bf16.msra.mxu0 %v819
    %950 = vmatprep.subr.bf16.mxu0 0
    %951 = vmatpush1.bf16.msra.mxu0 %v820
    %952 = vmatprep.subr.bf16.mxu0 0
    %953 = vmatpush1.bf16.msra.mxu0 %v821
    %954 = vmatprep.subr.bf16.mxu0 0
    %955 = vmatpush1.bf16.msra.mxu0 %v822
    %956 = vmatprep.subr.bf16.mxu0 0
    %957 = vmatpush1.bf16.msra.mxu0 %v823
    %958 = vmatprep.subr.bf16.mxu0 0
    %959 = vmatpush1.bf16.msra.mxu0 %v824
    %960 = vmatprep.subr.bf16.mxu0 0
    %961 = vmatpush1.bf16.msra.mxu0 %v825
    %962 = vmatprep.mubr.bf16.mxu0 %v595
    %963 = vmatmul.mubr.bf16.gmra.mrb[0].mxu0 %v594
    %v964 = vpop.f32.mrb[0].mxu0
    %v965 = vadd.f32 %v925, %v964
    %v966 = vpop.f32.mrb[0].mxu0
    %v967 = vpop.f32.mrb[0].mxu0
    %v968 = vpop.f32.mrb[0].mxu0
    %969 = vdwg.mxu0
    %970 = vmatprep.subr.bf16.mxu0 0
    %971 = vmatpush1.bf16.msra.mxu0 %v826
    %972 = vmatprep.subr.bf16.mxu0 0
    %973 = vmatpush1.bf16.msra.mxu0 %v827
    %974 = vmatprep.subr.bf16.mxu0 0
    %975 = vmatpush1.bf16.msra.mxu0 %v828
    %976 = vmatprep.subr.bf16.mxu0 0
    %977 = vmatpush1.bf16.msra.mxu0 %v829
    %978 = vmatprep.subr.bf16.mxu0 0
    %979 = vmatpush1.bf16.msra.mxu0 %v830
    %980 = vmatprep.subr.bf16.mxu0 0
    %981 = vmatpush1.bf16.msra.mxu0 %v831
    %982 = vmatprep.subr.bf16.mxu0 0
    %983 = vmatpush1.bf16.msra.mxu0 %v832
    %984 = vmatprep.subr.bf16.mxu0 0
    %985 = vmatpush1.bf16.msra.mxu0 %v833
    %986 = vmatprep.subr.bf16.mxu0 0
    %987 = vmatpush1.bf16.msra.mxu0 %v834
    %988 = vmatprep.subr.bf16.mxu0 0
    %989 = vmatpush1.bf16.msra.mxu0 %v835
    %990 = vmatprep.subr.bf16.mxu0 0
    %991 = vmatpush1.bf16.msra.mxu0 %v836
    %992 = vmatprep.subr.bf16.mxu0 0
    %993 = vmatpush1.bf16.msra.mxu0 %v837
    %994 = vmatprep.subr.bf16.mxu0 0
    %995 = vmatpush1.bf16.msra.mxu0 %v838
    %996 = vmatprep.subr.bf16.mxu0 0
    %997 = vmatpush1.bf16.msra.mxu0 %v839
    %998 = vmatprep.subr.bf16.mxu0 0
    %999 = vmatpush1.bf16.msra.mxu0 %v840
    %1000 = vmatprep.subr.bf16.mxu0 0
    %1001 = vmatpush1.bf16.msra.mxu0 %v841
    %1002 = vmatprep.mubr.bf16.mxu0 %v593
    %1003 = vmatmul.mubr.bf16.gmra.mrb[0].mxu0 %v579
    %v1004 = vpop.f32.mrb[0].mxu0
    %v1005 = vadd.f32 %v965, %v1004
    %v1006 = vpop.f32.mrb[0].mxu0
    %v1007 = vpop.f32.mrb[0].mxu0
    %v1008 = vpop.f32.mrb[0].mxu0
    %1009 = vdwg.mxu0
    %v1030 = vunpack.c.l.b16 %v271
    %v1031 = vunpack.c.l.b16 %v272
    %v1032 = vunpack.c.l.b16 %v273
    %v1033 = vunpack.c.l.b16 %v274
    %v1034 = vunpack.c.l.b16 %v275
    %v1035 = vunpack.c.l.b16 %v276
    %v1036 = vunpack.c.l.b16 %v277
    %v1037 = vunpack.c.l.b16 %v278
    %v1038 = vunpack.c.l.b16 %v279
    %v1039 = vunpack.c.l.b16 %v280
    %v1040 = vunpack.c.l.b16 %v281
    %v1041 = vunpack.c.l.b16 %v282
    %v1042 = vunpack.c.l.b16 %v283
    %v1043 = vunpack.c.l.b16 %v284
    %v1044 = vunpack.c.l.b16 %v285
    %v1045 = vunpack.c.l.b16 %v286
    %v1046 = vunpack.c.l.b16 %v287
    %v1047 = vunpack.c.l.b16 %v288
    %v1048 = vunpack.c.l.b16 %v289
    %v1049 = vunpack.c.l.b16 %v290
    %vm1050 = vcmask 1041409
    %v1051 = vsel %vm1050, %v1040, %v1030
    %v1052 = vsel %vm1050, %v1041, %v1031
    %v1053 = vsel %vm1050, %v1042, %v1032
    %v1054 = vsel %vm1050, %v1043, %v1033
    %v1055 = vsel %vm1050, %v1044, %v1034
    %v1056 = vsel %vm1050, %v1045, %v1035
    %v1057 = vsel %vm1050, %v1046, %v1036
    %v1058 = vsel %vm1050, %v1047, %v1037
    %v1059 = vsel %vm1050, %v1048, %v1038
    %v1060 = vsel %vm1050, %v1049, %v1039
    %v1061 = vpack.c.b16 %v1051, %v1051
    %v1062 = vpack.c.b16 %v1052, %v1052
    %v1063 = vpack.c.b16 %v1053, %v1053
    %v1064 = vpack.c.b16 %v1054, %v1054
    %v1065 = vpack.c.b16 %v1055, %v1055
    %v1066 = vpack.c.b16 %v1056, %v1056
    %v1067 = vpack.c.b16 %v1057, %v1057
    %v1068 = vpack.c.b16 %v1058, %v1058
    %v1069 = vpack.c.b16 %v1059, %v1059
    %v1070 = vpack.c.b16 %v1060, %v1060
    %v1241 = vunpack.c.l.b16 %v291
    %v1242 = vunpack.c.l.b16 %v292
    %v1243 = vunpack.c.l.b16 %v293
    %v1244 = vunpack.c.l.b16 %v294
    %v1245 = vunpack.c.l.b16 %v295
    %v1246 = vunpack.c.l.b16 %v296
    %v1247 = vunpack.c.l.b16 %v297
    %v1248 = vunpack.c.l.b16 %v298
    %v1249 = vunpack.c.l.b16 %v299
    %v1250 = vunpack.c.l.b16 %v300
    %v1251 = vunpack.c.l.b16 %v301
    %v1252 = vunpack.c.l.b16 %v302
    %v1253 = vunpack.c.l.b16 %v303
    %v1254 = vunpack.c.l.b16 %v304
    %v1255 = vunpack.c.l.b16 %v305
    %v1256 = vunpack.c.l.b16 %v306
    %v1257 = vunpack.c.l.b16 %v307
    %v1258 = vunpack.c.l.b16 %v308
    %v1259 = vunpack.c.l.b16 %v309
    %v1260 = vunpack.c.l.b16 %v310
    %v1261 = vunpack.c.l.b16 %v311
    %v1262 = vunpack.c.l.b16 %v312
    %v1263 = vunpack.c.l.b16 %v313
    %v1264 = vunpack.c.l.b16 %v314
    %v1265 = vunpack.c.l.b16 %v315
    %v1266 = vunpack.c.l.b16 %v316
    %v1267 = vunpack.c.l.b16 %v317
    %v1268 = vunpack.c.l.b16 %v318
    %v1269 = vunpack.c.l.b16 %v319
    %v1270 = vunpack.c.l.b16 %v320
    %v1271 = vunpack.c.l.b16 %v321
    %v1272 = vunpack.c.l.b16 %v322
    %v1273 = vunpack.c.l.b16 %v323
    %v1274 = vunpack.c.l.b16 %v324
    %v1275 = vunpack.c.l.b16 %v325
    %v1276 = vunpack.c.l.b16 %v326
    %v1277 = vunpack.c.l.b16 %v327
    %v1278 = vunpack.c.l.b16 %v328
    %v1279 = vunpack.c.l.b16 %v329
    %v1280 = vunpack.c.l.b16 %v330
    %v1281 = vunpack.c.l.b16 %v331
    %v1282 = vunpack.c.l.b16 %v332
    %v1283 = vunpack.c.l.b16 %v333
    %v1284 = vunpack.c.l.b16 %v334
    %v1285 = vunpack.c.l.b16 %v335
    %v1286 = vunpack.c.l.b16 %v336
    %v1287 = vunpack.c.l.b16 %v337
    %v1288 = vunpack.c.l.b16 %v338
    %v1289 = vunpack.c.l.b16 %v339
    %v1290 = vunpack.c.l.b16 %v340
    %v1291 = vunpack.c.l.b16 %v341
    %v1292 = vunpack.c.l.b16 %v342
    %v1293 = vunpack.c.l.b16 %v343
    %v1294 = vunpack.c.l.b16 %v344
    %v1295 = vunpack.c.l.b16 %v345
    %v1296 = vunpack.c.l.b16 %v346
    %v1297 = vunpack.c.l.b16 %v347
    %v1298 = vunpack.c.l.b16 %v348
    %v1299 = vunpack.c.l.b16 %v349
    %v1300 = vunpack.c.l.b16 %v350
    %v1301 = vunpack.c.l.b16 %v351
    %v1302 = vunpack.c.l.b16 %v352
    %v1303 = vunpack.c.l.b16 %v353
    %v1304 = vunpack.c.l.b16 %v354
    %v1305 = vunpack.c.l.b16 %v355
    %v1306 = vunpack.c.l.b16 %v356
    %v1307 = vunpack.c.l.b16 %v357
    %v1308 = vunpack.c.l.b16 %v358
    %v1309 = vunpack.c.l.b16 %v359
    %v1310 = vunpack.c.l.b16 %v360
    %v1311 = vunpack.c.l.b16 %v361
    %v1312 = vunpack.c.l.b16 %v362
    %v1313 = vunpack.c.l.b16 %v363
    %v1314 = vunpack.c.l.b16 %v364
    %v1315 = vunpack.c.l.b16 %v365
    %v1316 = vunpack.c.l.b16 %v366
    %v1317 = vunpack.c.l.b16 %v367
    %v1318 = vunpack.c.l.b16 %v368
    %v1319 = vunpack.c.l.b16 %v369
    %v1320 = vunpack.c.l.b16 %v370
    %v1321 = vunpack.c.l.b16 %v371
    %v1322 = vunpack.c.l.b16 %v372
    %v1323 = vunpack.c.l.b16 %v373
    %v1324 = vunpack.c.l.b16 %v374
    %v1325 = vunpack.c.l.b16 %v375
    %v1326 = vunpack.c.l.b16 %v376
    %v1327 = vunpack.c.l.b16 %v377
    %v1328 = vunpack.c.l.b16 %v378
    %v1329 = vunpack.c.l.b16 %v379
    %v1330 = vunpack.c.l.b16 %v380
    %v1331 = vunpack.c.l.b16 %v381
    %v1332 = vunpack.c.l.b16 %v382
    %v1333 = vunpack.c.l.b16 %v383
    %v1334 = vunpack.c.l.b16 %v384
    %v1335 = vunpack.c.l.b16 %v385
    %v1336 = vunpack.c.l.b16 %v386
    %v1337 = vunpack.c.l.b16 %v387
    %v1338 = vunpack.c.l.b16 %v388
    %v1339 = vunpack.c.l.b16 %v389
    %v1340 = vunpack.c.l.b16 %v390
    %v1341 = vunpack.c.l.b16 %v391
    %v1342 = vunpack.c.l.b16 %v392
    %v1343 = vunpack.c.l.b16 %v393
    %v1344 = vunpack.c.l.b16 %v394
    %v1345 = vunpack.c.l.b16 %v395
    %v1346 = vunpack.c.l.b16 %v396
    %v1347 = vunpack.c.l.b16 %v397
    %v1348 = vunpack.c.l.b16 %v398
    %v1349 = vunpack.c.l.b16 %v399
    %v1350 = vunpack.c.l.b16 %v400
    %v1351 = vunpack.c.l.b16 %v401
    %v1352 = vunpack.c.l.b16 %v402
    %v1353 = vunpack.c.l.b16 %v403
    %v1354 = vunpack.c.l.b16 %v404
    %v1355 = vunpack.c.l.b16 %v405
    %v1356 = vunpack.c.l.b16 %v406
    %v1357 = vunpack.c.l.b16 %v407
    %v1358 = vunpack.c.l.b16 %v408
    %v1359 = vunpack.c.l.b16 %v409
    %v1360 = vunpack.c.l.b16 %v410
    %v1361 = vunpack.c.l.b16 %v411
    %v1362 = vunpack.c.l.b16 %v412
    %v1363 = vunpack.c.l.b16 %v413
    %v1364 = vunpack.c.l.b16 %v414
    %v1365 = vunpack.c.l.b16 %v415
    %v1366 = vunpack.c.l.b16 %v416
    %v1367 = vunpack.c.l.b16 %v417
    %v1368 = vunpack.c.l.b16 %v418
    %v1369 = vunpack.c.l.b16 %v419
    %v1370 = vunpack.c.l.b16 %v420
    %v1371 = vunpack.c.l.b16 %v421
    %v1372 = vunpack.c.l.b16 %v422
    %v1373 = vunpack.c.l.b16 %v423
    %v1374 = vunpack.c.l.b16 %v424
    %v1375 = vunpack.c.l.b16 %v425
    %v1376 = vunpack.c.l.b16 %v426
    %v1377 = vunpack.c.l.b16 %v427
    %v1378 = vunpack.c.l.b16 %v428
    %v1379 = vunpack.c.l.b16 %v429
    %v1380 = vunpack.c.l.b16 %v430
    %v1381 = vunpack.c.l.b16 %v431
    %v1382 = vunpack.c.l.b16 %v432
    %v1383 = vunpack.c.l.b16 %v433
    %v1384 = vunpack.c.l.b16 %v434
    %v1385 = vunpack.c.l.b16 %v435
    %v1386 = vunpack.c.l.b16 %v436
    %v1387 = vunpack.c.l.b16 %v437
    %v1388 = vunpack.c.l.b16 %v438
    %v1389 = vunpack.c.l.b16 %v439
    %v1390 = vunpack.c.l.b16 %v440
    %v1391 = vunpack.c.l.b16 %v441
    %v1392 = vunpack.c.l.b16 %v442
    %v1393 = vunpack.c.l.b16 %v443
    %v1394 = vunpack.c.l.b16 %v444
    %v1395 = vunpack.c.l.b16 %v445
    %v1396 = vunpack.c.l.b16 %v446
    %v1397 = vunpack.c.l.b16 %v447
    %v1398 = vunpack.c.l.b16 %v448
    %v1399 = vunpack.c.l.b16 %v449
    %v1400 = vunpack.c.l.b16 %v450
    %v1401 = vpack.c.b16 %v1242, %v1241
    %v1402 = vpack.c.b16 %v1244, %v1243
    %v1403 = vpack.c.b16 %v1246, %v1245
    %v1404 = vpack.c.b16 %v1248, %v1247
    %v1405 = vpack.c.b16 %v1250, %v1249
    %v1406 = vpack.c.b16 %v1252, %v1251
    %v1407 = vpack.c.b16 %v1254, %v1253
    %v1408 = vpack.c.b16 %v1256, %v1255
    %v1409 = vpack.c.b16 %v1258, %v1257
    %v1410 = vpack.c.b16 %v1260, %v1259
    %v1411 = vpack.c.b16 %v1262, %v1261
    %v1412 = vpack.c.b16 %v1264, %v1263
    %v1413 = vpack.c.b16 %v1266, %v1265
    %v1414 = vpack.c.b16 %v1268, %v1267
    %v1415 = vpack.c.b16 %v1270, %v1269
    %v1416 = vpack.c.b16 %v1272, %v1271
    %v1417 = vpack.c.b16 %v1274, %v1273
    %v1418 = vpack.c.b16 %v1276, %v1275
    %v1419 = vpack.c.b16 %v1278, %v1277
    %v1420 = vpack.c.b16 %v1280, %v1279
    %v1421 = vpack.c.b16 %v1282, %v1281
    %v1422 = vpack.c.b16 %v1284, %v1283
    %v1423 = vpack.c.b16 %v1286, %v1285
    %v1424 = vpack.c.b16 %v1288, %v1287
    %v1425 = vpack.c.b16 %v1290, %v1289
    %v1426 = vpack.c.b16 %v1292, %v1291
    %v1427 = vpack.c.b16 %v1294, %v1293
    %v1428 = vpack.c.b16 %v1296, %v1295
    %v1429 = vpack.c.b16 %v1298, %v1297
    %v1430 = vpack.c.b16 %v1300, %v1299
    %v1431 = vpack.c.b16 %v1302, %v1301
    %v1432 = vpack.c.b16 %v1304, %v1303
    %v1433 = vpack.c.b16 %v1306, %v1305
    %v1434 = vpack.c.b16 %v1308, %v1307
    %v1435 = vpack.c.b16 %v1310, %v1309
    %v1436 = vpack.c.b16 %v1312, %v1311
    %v1437 = vpack.c.b16 %v1314, %v1313
    %v1438 = vpack.c.b16 %v1316, %v1315
    %v1439 = vpack.c.b16 %v1318, %v1317
    %v1440 = vpack.c.b16 %v1320, %v1319
    %v1441 = vpack.c.b16 %v1322, %v1321
    %v1442 = vpack.c.b16 %v1324, %v1323
    %v1443 = vpack.c.b16 %v1326, %v1325
    %v1444 = vpack.c.b16 %v1328, %v1327
    %v1445 = vpack.c.b16 %v1330, %v1329
    %v1446 = vpack.c.b16 %v1332, %v1331
    %v1447 = vpack.c.b16 %v1334, %v1333
    %v1448 = vpack.c.b16 %v1336, %v1335
    %v1449 = vpack.c.b16 %v1338, %v1337
    %v1450 = vpack.c.b16 %v1340, %v1339
    %v1451 = vpack.c.b16 %v1342, %v1341
    %v1452 = vpack.c.b16 %v1344, %v1343
    %v1453 = vpack.c.b16 %v1346, %v1345
    %v1454 = vpack.c.b16 %v1348, %v1347
    %v1455 = vpack.c.b16 %v1350, %v1349
    %v1456 = vpack.c.b16 %v1352, %v1351
    %v1457 = vpack.c.b16 %v1354, %v1353
    %v1458 = vpack.c.b16 %v1356, %v1355
    %v1459 = vpack.c.b16 %v1358, %v1357
    %v1460 = vpack.c.b16 %v1360, %v1359
    %v1461 = vpack.c.b16 %v1362, %v1361
    %v1462 = vpack.c.b16 %v1364, %v1363
    %v1463 = vpack.c.b16 %v1366, %v1365
    %v1464 = vpack.c.b16 %v1368, %v1367
    %v1465 = vpack.c.b16 %v1370, %v1369
    %v1466 = vpack.c.b16 %v1372, %v1371
    %v1467 = vpack.c.b16 %v1374, %v1373
    %v1468 = vpack.c.b16 %v1376, %v1375
    %v1469 = vpack.c.b16 %v1378, %v1377
    %v1470 = vpack.c.b16 %v1380, %v1379
    %v1471 = vpack.c.b16 %v1382, %v1381
    %v1472 = vpack.c.b16 %v1384, %v1383
    %v1473 = vpack.c.b16 %v1386, %v1385
    %v1474 = vpack.c.b16 %v1388, %v1387
    %v1475 = vpack.c.b16 %v1390, %v1389
    %v1476 = vpack.c.b16 %v1392, %v1391
    %v1477 = vpack.c.b16 %v1394, %v1393
    %v1478 = vpack.c.b16 %v1396, %v1395
    %v1479 = vpack.c.b16 %v1398, %v1397
    %v1480 = vpack.c.b16 %v1400, %v1399
    %1561 = vmatprep.subr.bf16.mxu0 0
    %1562 = vmatpush1.bf16.msra.mxu0 %v1401
    %1563 = vmatprep.subr.bf16.mxu0 0
    %1564 = vmatpush1.bf16.msra.mxu0 %v1402
    %1565 = vmatprep.subr.bf16.mxu0 0
    %1566 = vmatpush1.bf16.msra.mxu0 %v1403
    %1567 = vmatprep.subr.bf16.mxu0 0
    %1568 = vmatpush1.bf16.msra.mxu0 %v1404
    %1569 = vmatprep.subr.bf16.mxu0 0
    %1570 = vmatpush1.bf16.msra.mxu0 %v1405
    %1571 = vmatprep.subr.bf16.mxu0 0
    %1572 = vmatpush1.bf16.msra.mxu0 %v1406
    %1573 = vmatprep.subr.bf16.mxu0 0
    %1574 = vmatpush1.bf16.msra.mxu0 %v1407
    %1575 = vmatprep.subr.bf16.mxu0 0
    %1576 = vmatpush1.bf16.msra.mxu0 %v1408
    %1577 = vmatprep.subr.bf16.mxu0 0
    %1578 = vmatpush1.bf16.msra.mxu0 %v1409
    %1579 = vmatprep.subr.bf16.mxu0 0
    %1580 = vmatpush1.bf16.msra.mxu0 %v1410
    %1581 = vmatprep.subr.bf16.mxu0 0
    %1582 = vmatpush1.bf16.msra.mxu0 %v1411
    %1583 = vmatprep.subr.bf16.mxu0 0
    %1584 = vmatpush1.bf16.msra.mxu0 %v1412
    %1585 = vmatprep.subr.bf16.mxu0 0
    %1586 = vmatpush1.bf16.msra.mxu0 %v1413
    %1587 = vmatprep.subr.bf16.mxu0 0
    %1588 = vmatpush1.bf16.msra.mxu0 %v1414
    %1589 = vmatprep.subr.bf16.mxu0 0
    %1590 = vmatpush1.bf16.msra.mxu0 %v1415
    %1591 = vmatprep.subr.bf16.mxu0 0
    %1592 = vmatpush1.bf16.msra.mxu0 %v1416
    %1593 = vmatprep.mubr.bf16.mxu0 %v1062
    %1594 = vmatmul.mubr.bf16.gmra.mrb[0].mxu0 %v1061
    %v1595 = vpop.f32.mrb[0].mxu0
    %v1596 = vadd.f32 %v1005, %v1595
    %v1597 = vpop.f32.mrb[0].mxu0
    %v1598 = vpop.f32.mrb[0].mxu0
    %v1599 = vpop.f32.mrb[0].mxu0
    %1600 = vdwg.mxu0
    %1601 = vmatprep.subr.bf16.mxu0 0
    %1602 = vmatpush1.bf16.msra.mxu0 %v1417
    %1603 = vmatprep.subr.bf16.mxu0 0
    %1604 = vmatpush1.bf16.msra.mxu0 %v1418
    %1605 = vmatprep.subr.bf16.mxu0 0
    %1606 = vmatpush1.bf16.msra.mxu0 %v1419
    %1607 = vmatprep.subr.bf16.mxu0 0
    %1608 = vmatpush1.bf16.msra.mxu0 %v1420
    %1609 = vmatprep.subr.bf16.mxu0 0
    %1610 = vmatpush1.bf16.msra.mxu0 %v1421
    %1611 = vmatprep.subr.bf16.mxu0 0
    %1612 = vmatpush1.bf16.msra.mxu0 %v1422
    %1613 = vmatprep.subr.bf16.mxu0 0
    %1614 = vmatpush1.bf16.msra.mxu0 %v1423
    %1615 = vmatprep.subr.bf16.mxu0 0
    %1616 = vmatpush1.bf16.msra.mxu0 %v1424
    %1617 = vmatprep.subr.bf16.mxu0 0
    %1618 = vmatpush1.bf16.msra.mxu0 %v1425
    %1619 = vmatprep.subr.bf16.mxu0 0
    %1620 = vmatpush1.bf16.msra.mxu0 %v1426
    %1621 = vmatprep.subr.bf16.mxu0 0
    %1622 = vmatpush1.bf16.msra.mxu0 %v1427
    %1623 = vmatprep.subr.bf16.mxu0 0
    %1624 = vmatpush1.bf16.msra.mxu0 %v1428
    %1625 = vmatprep.subr.bf16.mxu0 0
    %1626 = vmatpush1.bf16.msra.mxu0 %v1429
    %1627 = vmatprep.subr.bf16.mxu0 0
    %1628 = vmatpush1.bf16.msra.mxu0 %v1430
    %1629 = vmatprep.subr.bf16.mxu0 0
    %1630 = vmatpush1.bf16.msra.mxu0 %v1431
    %1631 = vmatprep.subr.bf16.mxu0 0
    %1632 = vmatpush1.bf16.msra.mxu0 %v1432
    %1633 = vmatprep.mubr.bf16.mxu0 %v1064
    %1634 = vmatmul.mubr.bf16.gmra.mrb[0].mxu0 %v1063
    %v1635 = vpop.f32.mrb[0].mxu0
    %v1636 = vadd.f32 %v1596, %v1635
    %v1637 = vpop.f32.mrb[0].mxu0
    %v1638 = vpop.f32.mrb[0].mxu0
    %v1639 = vpop.f32.mrb[0].mxu0
    %1640 = vdwg.mxu0
    %1641 = vmatprep.subr.bf16.mxu0 0
    %1642 = vmatpush1.bf16.msra.mxu0 %v1433
    %1643 = vmatprep.subr.bf16.mxu0 0
    %1644 = vmatpush1.bf16.msra.mxu0 %v1434
    %1645 = vmatprep.subr.bf16.mxu0 0
    %1646 = vmatpush1.bf16.msra.mxu0 %v1435
    %1647 = vmatprep.subr.bf16.mxu0 0
    %1648 = vmatpush1.bf16.msra.mxu0 %v1436
    %1649 = vmatprep.subr.bf16.mxu0 0
    %1650 = vmatpush1.bf16.msra.mxu0 %v1437
    %1651 = vmatprep.subr.bf16.mxu0 0
    %1652 = vmatpush1.bf16.msra.mxu0 %v1438
    %1653 = vmatprep.subr.bf16.mxu0 0
    %1654 = vmatpush1.bf16.msra.mxu0 %v1439
    %1655 = vmatprep.subr.bf16.mxu0 0
    %1656 = vmatpush1.bf16.msra.mxu0 %v1440
    %1657 = vmatprep.subr.bf16.mxu0 0
    %1658 = vmatpush1.bf16.msra.mxu0 %v1441
    %1659 = vmatprep.subr.bf16.mxu0 0
    %1660 = vmatpush1.bf16.msra.mxu0 %v1442
    %1661 = vmatprep.subr.bf16.mxu0 0
    %1662 = vmatpush1.bf16.msra.mxu0 %v1443
    %1663 = vmatprep.subr.bf16.mxu0 0
    %1664 = vmatpush1.bf16.msra.mxu0 %v1444
    %1665 = vmatprep.subr.bf16.mxu0 0
    %1666 = vmatpush1.bf16.msra.mxu0 %v1445
    %1667 = vmatprep.subr.bf16.mxu0 0
    %1668 = vmatpush1.bf16.msra.mxu0 %v1446
    %1669 = vmatprep.subr.bf16.mxu0 0
    %1670 = vmatpush1.bf16.msra.mxu0 %v1447
    %1671 = vmatprep.subr.bf16.mxu0 0
    %1672 = vmatpush1.bf16.msra.mxu0 %v1448
    %1673 = vmatprep.mubr.bf16.mxu0 %v1066
    %1674 = vmatmul.mubr.bf16.gmra.mrb[0].mxu0 %v1065
    %v1675 = vpop.f32.mrb[0].mxu0
    %v1676 = vadd.f32 %v1636, %v1675
    %v1677 = vpop.f32.mrb[0].mxu0
    %v1678 = vpop.f32.mrb[0].mxu0
    %v1679 = vpop.f32.mrb[0].mxu0
    %1680 = vdwg.mxu0
    %1681 = vmatprep.subr.bf16.mxu0 0
    %1682 = vmatpush1.bf16.msra.mxu0 %v1449
    %1683 = vmatprep.subr.bf16.mxu0 0
    %1684 = vmatpush1.bf16.msra.mxu0 %v1450
    %1685 = vmatprep.subr.bf16.mxu0 0
    %1686 = vmatpush1.bf16.msra.mxu0 %v1451
    %1687 = vmatprep.subr.bf16.mxu0 0
    %1688 = vmatpush1.bf16.msra.mxu0 %v1452
    %1689 = vmatprep.subr.bf16.mxu0 0
    %1690 = vmatpush1.bf16.msra.mxu0 %v1453
    %1691 = vmatprep.subr.bf16.mxu0 0
    %1692 = vmatpush1.bf16.msra.mxu0 %v1454
    %1693 = vmatprep.subr.bf16.mxu0 0
    %1694 = vmatpush1.bf16.msra.mxu0 %v1455
    %1695 = vmatprep.subr.bf16.mxu0 0
    %1696 = vmatpush1.bf16.msra.mxu0 %v1456
    %1697 = vmatprep.subr.bf16.mxu0 0
    %1698 = vmatpush1.bf16.msra.mxu0 %v1457
    %1699 = vmatprep.subr.bf16.mxu0 0
    %1700 = vmatpush1.bf16.msra.mxu0 %v1458
    %1701 = vmatprep.subr.bf16.mxu0 0
    %1702 = vmatpush1.bf16.msra.mxu0 %v1459
    %1703 = vmatprep.subr.bf16.mxu0 0
    %1704 = vmatpush1.bf16.msra.mxu0 %v1460
    %1705 = vmatprep.subr.bf16.mxu0 0
    %1706 = vmatpush1.bf16.msra.mxu0 %v1461
    %1707 = vmatprep.subr.bf16.mxu0 0
    %1708 = vmatpush1.bf16.msra.mxu0 %v1462
    %1709 = vmatprep.subr.bf16.mxu0 0
    %1710 = vmatpush1.bf16.msra.mxu0 %v1463
    %1711 = vmatprep.subr.bf16.mxu0 0
    %1712 = vmatpush1.bf16.msra.mxu0 %v1464
    %1713 = vmatprep.mubr.bf16.mxu0 %v1068
    %1714 = vmatmul.mubr.bf16.gmra.mrb[0].mxu0 %v1067
    %v1715 = vpop.f32.mrb[0].mxu0
    %v1716 = vadd.f32 %v1676, %v1715
    %v1717 = vpop.f32.mrb[0].mxu0
    %v1718 = vpop.f32.mrb[0].mxu0
    %v1719 = vpop.f32.mrb[0].mxu0
    %1720 = vdwg.mxu0
    %1721 = vmatprep.subr.bf16.mxu0 0
    %1722 = vmatpush1.bf16.msra.mxu0 %v1465
    %1723 = vmatprep.subr.bf16.mxu0 0
    %1724 = vmatpush1.bf16.msra.mxu0 %v1466
    %1725 = vmatprep.subr.bf16.mxu0 0
    %1726 = vmatpush1.bf16.msra.mxu0 %v1467
    %1727 = vmatprep.subr.bf16.mxu0 0
    %1728 = vmatpush1.bf16.msra.mxu0 %v1468
    %1729 = vmatprep.subr.bf16.mxu0 0
    %1730 = vmatpush1.bf16.msra.mxu0 %v1469
    %1731 = vmatprep.subr.bf16.mxu0 0
    %1732 = vmatpush1.bf16.msra.mxu0 %v1470
    %1733 = vmatprep.subr.bf16.mxu0 0
    %1734 = vmatpush1.bf16.msra.mxu0 %v1471
    %1735 = vmatprep.subr.bf16.mxu0 0
    %1736 = vmatpush1.bf16.msra.mxu0 %v1472
    %1737 = vmatprep.subr.bf16.mxu0 0
    %1738 = vmatpush1.bf16.msra.mxu0 %v1473
    %1739 = vmatprep.subr.bf16.mxu0 0
    %1740 = vmatpush1.bf16.msra.mxu0 %v1474
    %1741 = vmatprep.subr.bf16.mxu0 0
    %1742 = vmatpush1.bf16.msra.mxu0 %v1475
    %1743 = vmatprep.subr.bf16.mxu0 0
    %1744 = vmatpush1.bf16.msra.mxu0 %v1476
    %1745 = vmatprep.subr.bf16.mxu0 0
    %1746 = vmatpush1.bf16.msra.mxu0 %v1477
    %1747 = vmatprep.subr.bf16.mxu0 0
    %1748 = vmatpush1.bf16.msra.mxu0 %v1478
    %1749 = vmatprep.subr.bf16.mxu0 0
    %1750 = vmatpush1.bf16.msra.mxu0 %v1479
    %1751 = vmatprep.subr.bf16.mxu0 0
    %1752 = vmatpush1.bf16.msra.mxu0 %v1480
    %1753 = vmatprep.mubr.bf16.mxu0 %v1070
    %1754 = vmatmul.mubr.bf16.gmra.mrb[0].mxu0 %v1069
    %v1755 = vpop.f32.mrb[0].mxu0
    %v1756 = vadd.f32 %v1716, %v1755
    %v1757 = vpop.f32.mrb[0].mxu0
    %v1758 = vpop.f32.mrb[0].mxu0
    %v1759 = vpop.f32.mrb[0].mxu0
    %1760 = vdwg.mxu0
    %v1761 = vld [vmem:[%s4] sm:$0x1]
    %v1763 = vlaneseq
    %v1764 = vshrl.u32 %v1763, 7
    %v1765 = vsub.s32 0, %v1764
    %v1766 = vrot.slane %v1761, %v1765
    %v1768 = vadd.f32 %v1756, %v1766
    %1769 = vst [vmem:[#allocation7] sm:$0x3] %v1768
    // Predicated region
    $region30: #{_lambda_.1} parent=1 // pred_check
      _
    $region31: #{_lambda_.1} parent=1 // pred_check_branch
      %1771 = sbr.rel (0) target = $region33
    $region32: #{_lambda_.1} parent=1 // pred_region
      %s1773 = ssub.s32 32, 32
      %1774 = vsyncadd [#allocation4], %s1773
      %s1776 = sshll.u32 [#allocation7], 4
      %s1777 = int_to_ptr.vmem [resolvable:$true] %s1776
      %1779 = dma.vmem_to_hbm [thread:$0]  %s1777, 32, %s5, [#allocation4]
    $region33: #{_lambda_.1} parent=1 // pred_fallthru
      _
    // Predicated region
    $region34: #{_lambda_.1} parent=1 // pred_check
      _
    $region35: #{_lambda_.1} parent=1 // pred_check_branch
      %1781 = sbr.rel (0) target = $region37
    $region36: #{_lambda_.1} parent=1 // pred_region
      %1782 = dma.done [#allocation4], 32
    $region37: #{_lambda_.1} parent=1 // pred_fallthru
      _
    %1783 = vsyncpa [#allocation3], 1
    %1784 = vsyncpa [#allocation6], 1
    %1785 = vsyncpa [#allocation4], 1

</llo_original>
